<compile_context>
chip_gen: v7x
topology: tpu7x:2x2x1
jax: 0.10.0
libtpu: 0.0.40
codegen_flags: <defaults>
</compile_context>

<pallas_src>
import jax
import jax.numpy as jnp
from jax.experimental import pallas as pl
from jax.experimental.pallas import tpu as pltpu


def pai_head_kernel(j_ref, q_ref, mf_ref, w_up_ref, b_up_ref,
                    wh_ref, bh_ref, wq_ref, bq_ref,
                    wcls_ref, bcls_ref, wbb_ref, bbb_ref,
                    hm_ref, mask_ref, kp_ref, bbox_ref):
    """Processes a block of `bb` batch elements per grid step.

    j_ref:   (bb*nk, C)   flattened joints embeddings
    q_ref:   (bb*n,  C)   query embeddings
    mf_ref:  (bb, C, HW)  flattened mask features
    wh/wq:   (C, C)  transposed Linear weights; bh/bq: (1, C) biases
    wcls:    (C, 3), bcls: (1, 3);  wbb: (C, 4), bbb: (1, 4)
    """
    C = w_up_ref.shape[0]
    bb = mf_ref.shape[0]
    nk = j_ref.shape[0] // bb
    n = q_ref.shape[0] // bb

    # Linear projections for all rows of the batch block (one MXU call each),
    # bias via VPU broadcast add.
    heat = jnp.dot(j_ref[...], wh_ref[...],
                   preferred_element_type=jnp.float32) + bh_ref[...]   # (bb*nk, C)
    qry = jnp.dot(q_ref[...], wq_ref[...],
                  preferred_element_type=jnp.float32) + bq_ref[...]    # (bb*n, C)

    # Tiny heads fused into the kernel (removes two standalone XLA launches);
    # narrow lane-masked stores are negligible at this size.
    kp_ref[...] = jnp.dot(j_ref[...], wcls_ref[...],
                          preferred_element_type=jnp.float32) + bcls_ref[...]
    bbox_ref[...] = jnp.dot(q_ref[...], wbb_ref[...],
                            preferred_element_type=jnp.float32) + bbb_ref[...]

    # Per-batch 1x1 conv (upx4) and the two projections onto mask features.
    # bb is a small static constant (1 or B), so this unrolls fully; row
    # offsets are multiples of nk / n which are sublane-aligned by wrapper
    # construction.
    for b in range(bb):
        mf = jnp.dot(w_up_ref[...], mf_ref[b],
                     preferred_element_type=jnp.float32) + b_up_ref[...]   # (C, HW)
        hm_ref[b * nk:(b + 1) * nk, :] = jnp.dot(
            heat[b * nk:(b + 1) * nk, :], mf, preferred_element_type=jnp.float32)
        mask_ref[b * n:(b + 1) * n, :] = jnp.dot(
            qry[b * n:(b + 1) * n, :], mf, preferred_element_type=jnp.float32)


def _default_batch_block(B):
    """grid=(B,) 'parallel' on multi-TensorCore chips (v4/v5p/v7x); fold the
    whole batch into one grid step on single-TC chips (v5e/v6e)."""
    try:
        kind = jax.devices()[0].device_kind.lower()
    except Exception:
        return 1
    multi_tc = any(tag in kind for tag in ("v4", "v5p", "v7", "7x"))
    return 1 if (multi_tc and B > 1) else B


def pai_head_forward(query_emb, joints_emb, mask_features, params,
                     batch_block=None):
    B, n, C = query_emb.shape
    k = joints_emb.shape[2]
    H, W = mask_features.shape[2], mask_features.shape[3]
    HW = H * W
    nk = n * k
    f32 = jnp.float32

    bb = _default_batch_block(B) if batch_block is None else batch_block
    # Fall back to a single full-block grid step if per-batch row blocks would
    # not be sublane-aligned or bb does not divide B (full blocks are exempt
    # from the (8,128) divisibility rule).
    if B % bb != 0 or (bb < B and (nk % 8 != 0 or n % 8 != 0)):
        bb = B
    num_steps = B // bb

    # ---- wrapper-side layout glue (free reshapes + tiny weight transposes) --
    j_flat = joints_emb.reshape(B * nk, C)
    q_flat = query_emb.reshape(B * n, C)
    mf_flat = mask_features.reshape(B, C, HW)

    w_up = params['w_up']                           # (C, C)   (out, in)
    b_up = params['b_up'].reshape(C, 1)
    w_h = params['w_h'].T                           # (C, C)
    b_h = params['b_h'].reshape(1, C)
    w_q = params['w_q'].T                           # (C, C)
    b_q = params['b_q'].reshape(1, C)
    w_cls = params['w_cls'].T                       # (C, 3)
    b_cls = params['b_cls'].reshape(1, 3)
    w_bb = params['w_bb'].T                         # (C, 4)
    b_bb = params['b_bb'].reshape(1, 4)

    def rows(r, c):
        return pl.BlockSpec((r, c), lambda i: (i, 0))

    def const(shape):
        nd = len(shape)
        return pl.BlockSpec(shape, lambda i, _nd=nd: (0,) * _nd)

    out_shapes = (
        jax.ShapeDtypeStruct((B * nk, HW), f32),    # heatmaps (flat, lane-dense)
        jax.ShapeDtypeStruct((B * n, HW), f32),     # masks (flat, lane-dense)
        jax.ShapeDtypeStruct((B * nk, 3), f32),     # keypoints
        jax.ShapeDtypeStruct((B * n, 4), f32),      # bboxes
    )

    hm, masks, kp, bbox = pl.pallas_call(
        pai_head_kernel,
        out_shape=out_shapes,
        grid=(num_steps,),
        in_specs=[
            rows(bb * nk, C),                               # joints rows
            rows(bb * n, C),                                # query rows
            pl.BlockSpec((bb, C, HW), lambda i: (i, 0, 0)),  # mask features
            const((C, C)), const((C, 1)),                   # upx4 conv1x1
            const((C, C)), const((1, C)),                   # heat_emb
            const((C, C)), const((1, C)),                   # query_emb
            const((C, 3)), const((1, 3)),                   # classification_head
            const((C, 4)), const((1, 4)),                   # bbox_head
        ],
        out_specs=[
            rows(bb * nk, HW),
            rows(bb * n, HW),
            rows(bb * nk, 3),
            rows(bb * n, 4),
        ],
        compiler_params=pltpu.CompilerParams(
            dimension_semantics=("parallel",)),
    )(j_flat, q_flat, mf_flat, w_up, b_up,
      w_h, b_h, w_q, b_q, w_cls, b_cls, w_bb, b_bb)

    return {
        'keypoints': kp.reshape(B, n, k, 3),
        'heatmaps': hm.reshape(B, n, k, H, W),
        'masks': masks.reshape(B, n, H, W),
        'bboxes': bbox.reshape(B, n, 4),
    }


def pai_head_reference(query_emb, joints_emb, mask_features, params):
    """Pure-JAX reference mirroring the PyTorch forward."""
    B, n, C = query_emb.shape
    k = joints_emb.shape[2]
    H, W = mask_features.shape[2], mask_features.shape[3]
    mf = jnp.einsum('oc,bchw->bohw', params['w_up'], mask_features) \
        + params['b_up'][None, :, None, None]
    mf_flat = mf.reshape(B, C, H * W)
    heat = joints_emb @ params['w_h'].T + params['b_h']
    heatmaps = jnp.einsum('bnkc,bcm->bnkm', heat, mf_flat).reshape(B, n, k, H, W)
    q = query_emb @ params['w_q'].T + params['b_q']
    masks = jnp.einsum('bnc,bcm->bnm', q, mf_flat).reshape(B, n, H, W)
    bboxes = query_emb @ params['w_bb'].T + params['b_bb']
    keypoints = joints_emb @ params['w_cls'].T + params['b_cls']
    return {'keypoints': keypoints, 'heatmaps': heatmaps,
            'masks': masks, 'bboxes': bboxes}


def make_params(key, C):
    # Deterministic synthetic init (init_weights_ replaced by scaled normals).
    keys = jax.random.split(key, 10)
    s = 0.02
    return {
        'w_up':  s * jax.random.normal(keys[0], (C, C), jnp.float32),
        'b_up':  s * jax.random.normal(keys[1], (C,), jnp.float32),
        'w_q':   s * jax.random.normal(keys[2], (C, C), jnp.float32),
        'b_q':   s * jax.random.normal(keys[3], (C,), jnp.float32),
        'w_h':   s * jax.random.normal(keys[4], (C, C), jnp.float32),
        'b_h':   s * jax.random.normal(keys[5], (C,), jnp.float32),
        'w_bb':  s * jax.random.normal(keys[6], (4, C), jnp.float32),
        'b_bb':  s * jax.random.normal(keys[7], (4,), jnp.float32),
        'w_cls': s * jax.random.normal(keys[8], (3, C), jnp.float32),
        'b_cls': s * jax.random.normal(keys[9], (3,), jnp.float32),
    }


if __name__ == "__main__":
    B, n, k, C, H, W = 2, 8, 4, 32, 16, 16
    key = jax.random.PRNGKey(0)
    k0, k1, k2, k3 = jax.random.split(key, 4)

    query_emb = jax.random.normal(k0, (B, n, C), jnp.float32)
    joints_emb = jax.random.normal(k1, (B, n, k, C), jnp.float32)
    mask_features = jax.random.normal(k2, (B, C, H, W), jnp.float32)
    params = make_params(k3, C)

    ref = pai_head_reference(query_emb, joints_emb, mask_features, params)

    # Exercise both batch mappings (grid=(B,) parallel for multi-TC chips and
    # the single fused step for single-TC chips), plus the device default.
    for bb in (1, B, None):
        out = pai_head_forward(query_emb, joints_emb, mask_features, params,
                               batch_block=bb)
        out = jax.tree_util.tree_map(jax.block_until_ready, out)
        for name in ('keypoints', 'heatmaps', 'masks', 'bboxes'):
            assert out[name].shape == ref[name].shape, (bb, name)
            assert jnp.allclose(out[name], ref[name], rtol=1e-4, atol=1e-4), (bb, name)

    print("KERNEL_OK")
</pallas_src>

<mosaic_0001>
module attributes {stable_mosaic.version = 11 : i64} {
  func.func @pai_head_kernel(%arg0: i32, %arg1: memref<32x32xf32, #tpu.memory_space<vmem>>, %arg2: memref<8x32xf32, #tpu.memory_space<vmem>>, %arg3: memref<1x32x256xf32, #tpu.memory_space<vmem>>, %arg4: memref<32x32xf32, #tpu.memory_space<vmem>>, %arg5: memref<32x1xf32, #tpu.memory_space<vmem>>, %arg6: memref<32x32xf32, #tpu.memory_space<vmem>>, %arg7: memref<1x32xf32, #tpu.memory_space<vmem>>, %arg8: memref<32x32xf32, #tpu.memory_space<vmem>>, %arg9: memref<1x32xf32, #tpu.memory_space<vmem>>, %arg10: memref<32x3xf32, #tpu.memory_space<vmem>>, %arg11: memref<1x3xf32, #tpu.memory_space<vmem>>, %arg12: memref<32x4xf32, #tpu.memory_space<vmem>>, %arg13: memref<1x4xf32, #tpu.memory_space<vmem>>, %arg14: memref<32x256xf32, #tpu.memory_space<vmem>>, %arg15: memref<8x256xf32, #tpu.memory_space<vmem>>, %arg16: memref<32x3xf32, #tpu.memory_space<vmem>>, %arg17: memref<8x4xf32, #tpu.memory_space<vmem>>) attributes {dimension_semantics = [#tpu.dimension_semantics<parallel>], iteration_bounds = array<i64: 2>, scalar_prefetch = 0 : i64, scratch_operands = 0 : i64, tpu.core_type = #tpu.core_type<tc>, window_params = [{transform_indices = @transform_0, window_bounds = array<i64: 32, 32>}, {transform_indices = @transform_1, window_bounds = array<i64: 8, 32>}, {transform_indices = @transform_2, window_bounds = array<i64: 1, 32, 256>}, {pipeline_mode = #tpu.pipeline_mode<synchronous>, transform_indices = @transform_3, window_bounds = array<i64: 32, 32>}, {pipeline_mode = #tpu.pipeline_mode<synchronous>, transform_indices = @transform_4, window_bounds = array<i64: 32, 1>}, {pipeline_mode = #tpu.pipeline_mode<synchronous>, transform_indices = @transform_5, window_bounds = array<i64: 32, 32>}, {pipeline_mode = #tpu.pipeline_mode<synchronous>, transform_indices = @transform_6, window_bounds = array<i64: 1, 32>}, {pipeline_mode = #tpu.pipeline_mode<synchronous>, transform_indices = @transform_7, window_bounds = array<i64: 32, 32>}, {pipeline_mode = #tpu.pipeline_mode<synchronous>, transform_indices = @transform_8, window_bounds = array<i64: 1, 32>}, {pipeline_mode = #tpu.pipeline_mode<synchronous>, transform_indices = @transform_9, window_bounds = array<i64: 32, 3>}, {pipeline_mode = #tpu.pipeline_mode<synchronous>, transform_indices = @transform_10, window_bounds = array<i64: 1, 3>}, {pipeline_mode = #tpu.pipeline_mode<synchronous>, transform_indices = @transform_11, window_bounds = array<i64: 32, 4>}, {pipeline_mode = #tpu.pipeline_mode<synchronous>, transform_indices = @transform_12, window_bounds = array<i64: 1, 4>}, {transform_indices = @transform_13, window_bounds = array<i64: 32, 256>}, {transform_indices = @transform_14, window_bounds = array<i64: 8, 256>}, {transform_indices = @transform_15, window_bounds = array<i64: 32, 3>}, {transform_indices = @transform_16, window_bounds = array<i64: 8, 4>}]} {
    %c0 = arith.constant 0 : index
    %c0_0 = arith.constant 0 : index
    %0 = vector.load %arg1[%c0, %c0_0] : memref<32x32xf32, #tpu.memory_space<vmem>>, vector<32x32xf32>
    %c0_1 = arith.constant 0 : index
    %c0_2 = arith.constant 0 : index
    %1 = vector.load %arg6[%c0_1, %c0_2] : memref<32x32xf32, #tpu.memory_space<vmem>>, vector<32x32xf32>
    %cst = arith.constant dense<0.000000e+00> : vector<32x32xf32>
    %2 = tpu.matmul %0, %1, %cst {dimension_numbers = #tpu.dot_dimension_numbers<[1], [0], [0], [1], [0, 0, 1, 1], [], []>} : vector<32x32xf32>, vector<32x32xf32>, vector<32x32xf32> -> vector<32x32xf32>
    %c0_3 = arith.constant 0 : index
    %c0_4 = arith.constant 0 : index
    %3 = vector.load %arg7[%c0_3, %c0_4] : memref<1x32xf32, #tpu.memory_space<vmem>>, vector<1x32xf32>
    %4 = vector.broadcast %3 : vector<1x32xf32> to vector<32x32xf32>
    %5 = arith.addf %2, %4 : vector<32x32xf32>
    %c0_5 = arith.constant 0 : index
    %c0_6 = arith.constant 0 : index
    %6 = vector.load %arg2[%c0_5, %c0_6] : memref<8x32xf32, #tpu.memory_space<vmem>>, vector<8x32xf32>
    %c0_7 = arith.constant 0 : index
    %c0_8 = arith.constant 0 : index
    %7 = vector.load %arg8[%c0_7, %c0_8] : memref<32x32xf32, #tpu.memory_space<vmem>>, vector<32x32xf32>
    %cst_9 = arith.constant dense<0.000000e+00> : vector<8x32xf32>
    %8 = tpu.matmul %6, %7, %cst_9 {dimension_numbers = #tpu.dot_dimension_numbers<[1], [0], [0], [1], [0, 0, 1, 1], [], []>} : vector<8x32xf32>, vector<32x32xf32>, vector<8x32xf32> -> vector<8x32xf32>
    %c0_10 = arith.constant 0 : index
    %c0_11 = arith.constant 0 : index
    %9 = vector.load %arg9[%c0_10, %c0_11] : memref<1x32xf32, #tpu.memory_space<vmem>>, vector<1x32xf32>
    %10 = vector.broadcast %9 : vector<1x32xf32> to vector<8x32xf32>
    %11 = arith.addf %8, %10 : vector<8x32xf32>
    %c0_12 = arith.constant 0 : index
    %c0_13 = arith.constant 0 : index
    %12 = vector.load %arg1[%c0_12, %c0_13] : memref<32x32xf32, #tpu.memory_space<vmem>>, vector<32x32xf32>
    %c0_14 = arith.constant 0 : index
    %c0_15 = arith.constant 0 : index
    %13 = vector.load %arg10[%c0_14, %c0_15] : memref<32x3xf32, #tpu.memory_space<vmem>>, vector<32x3xf32>
    %cst_16 = arith.constant dense<0.000000e+00> : vector<32x3xf32>
    %14 = tpu.matmul %12, %13, %cst_16 {dimension_numbers = #tpu.dot_dimension_numbers<[1], [0], [0], [1], [0, 0, 1, 1], [], []>} : vector<32x32xf32>, vector<32x3xf32>, vector<32x3xf32> -> vector<32x3xf32>
    %c0_17 = arith.constant 0 : index
    %c0_18 = arith.constant 0 : index
    %15 = vector.load %arg11[%c0_17, %c0_18] : memref<1x3xf32, #tpu.memory_space<vmem>>, vector<1x3xf32>
    %16 = vector.broadcast %15 : vector<1x3xf32> to vector<32x3xf32>
    %17 = arith.addf %14, %16 : vector<32x3xf32>
    %c0_19 = arith.constant 0 : index
    %c0_20 = arith.constant 0 : index
    %18 = vector.load %arg16[%c0_19, %c0_20] : memref<32x3xf32, #tpu.memory_space<vmem>>, vector<32x3xf32>
    tpu.vector_store %arg16[%c0_19, %c0_20], %17 {strides = array<i32>} : memref<32x3xf32, #tpu.memory_space<vmem>>, vector<32x3xf32>,
    %c0_21 = arith.constant 0 : index
    %c0_22 = arith.constant 0 : index
    %19 = vector.load %arg2[%c0_21, %c0_22] : memref<8x32xf32, #tpu.memory_space<vmem>>, vector<8x32xf32>
    %c0_23 = arith.constant 0 : index
    %c0_24 = arith.constant 0 : index
    %20 = vector.load %arg12[%c0_23, %c0_24] : memref<32x4xf32, #tpu.memory_space<vmem>>, vector<32x4xf32>
    %cst_25 = arith.constant dense<0.000000e+00> : vector<8x4xf32>
    %21 = tpu.matmul %19, %20, %cst_25 {dimension_numbers = #tpu.dot_dimension_numbers<[1], [0], [0], [1], [0, 0, 1, 1], [], []>} : vector<8x32xf32>, vector<32x4xf32>, vector<8x4xf32> -> vector<8x4xf32>
    %c0_26 = arith.constant 0 : index
    %c0_27 = arith.constant 0 : index
    %22 = vector.load %arg13[%c0_26, %c0_27] : memref<1x4xf32, #tpu.memory_space<vmem>>, vector<1x4xf32>
    %23 = vector.broadcast %22 : vector<1x4xf32> to vector<8x4xf32>
    %24 = arith.addf %21, %23 : vector<8x4xf32>
    %c0_28 = arith.constant 0 : index
    %c0_29 = arith.constant 0 : index
    %25 = vector.load %arg17[%c0_28, %c0_29] : memref<8x4xf32, #tpu.memory_space<vmem>>, vector<8x4xf32>
    tpu.vector_store %arg17[%c0_28, %c0_29], %24 {strides = array<i32>} : memref<8x4xf32, #tpu.memory_space<vmem>>, vector<8x4xf32>,
    %c0_30 = arith.constant 0 : index
    %c0_31 = arith.constant 0 : index
    %26 = vector.load %arg4[%c0_30, %c0_31] : memref<32x32xf32, #tpu.memory_space<vmem>>, vector<32x32xf32>
    %c0_32 = arith.constant 0 : index
    %c0_33 = arith.constant 0 : index
    %c0_34 = arith.constant 0 : index
    %27 = vector.load %arg3[%c0_32, %c0_33, %c0_34] : memref<1x32x256xf32, #tpu.memory_space<vmem>>, vector<1x32x256xf32>
    %28 = vector.shape_cast %27 : vector<1x32x256xf32> to vector<32x256xf32>
    %cst_35 = arith.constant dense<0.000000e+00> : vector<32x256xf32>
    %29 = tpu.matmul %26, %28, %cst_35 {dimension_numbers = #tpu.dot_dimension_numbers<[1], [0], [0], [1], [0, 0, 1, 1], [], []>} : vector<32x32xf32>, vector<32x256xf32>, vector<32x256xf32> -> vector<32x256xf32>
    %c0_36 = arith.constant 0 : index
    %c0_37 = arith.constant 0 : index
    %30 = vector.load %arg5[%c0_36, %c0_37] : memref<32x1xf32, #tpu.memory_space<vmem>>, vector<32x1xf32>
    %31 = vector.broadcast %30 : vector<32x1xf32> to vector<32x256xf32>
    %32 = arith.addf %29, %31 : vector<32x256xf32>
    %cst_38 = arith.constant dense<0.000000e+00> : vector<32x256xf32>
    %33 = tpu.matmul %5, %32, %cst_38 {dimension_numbers = #tpu.dot_dimension_numbers<[1], [0], [0], [1], [0, 0, 1, 1], [], []>} : vector<32x32xf32>, vector<32x256xf32>, vector<32x256xf32> -> vector<32x256xf32>
    %c0_39 = arith.constant 0 : index
    %c0_40 = arith.constant 0 : index
    %34 = vector.load %arg14[%c0_39, %c0_40] : memref<32x256xf32, #tpu.memory_space<vmem>>, vector<32x256xf32>
    tpu.vector_store %arg14[%c0_39, %c0_40], %33 {strides = array<i32>} : memref<32x256xf32, #tpu.memory_space<vmem>>, vector<32x256xf32>,
    %cst_41 = arith.constant dense<0.000000e+00> : vector<8x256xf32>
    %35 = tpu.matmul %11, %32, %cst_41 {dimension_numbers = #tpu.dot_dimension_numbers<[1], [0], [0], [1], [0, 0, 1, 1], [], []>} : vector<8x32xf32>, vector<32x256xf32>, vector<8x256xf32> -> vector<8x256xf32>
    %c0_42 = arith.constant 0 : index
    %c0_43 = arith.constant 0 : index
    %36 = vector.load %arg15[%c0_42, %c0_43] : memref<8x256xf32, #tpu.memory_space<vmem>>, vector<8x256xf32>
    tpu.vector_store %arg15[%c0_42, %c0_43], %35 {strides = array<i32>} : memref<8x256xf32, #tpu.memory_space<vmem>>, vector<8x256xf32>,
    return
  }
  func.func @transform_0(%arg0: i32) -> (i32, i32) {
    %c0_i32 = arith.constant 0 : i32
    %c0_i32_0 = arith.constant 0 : i32
    return %arg0, %c0_i32 : i32, i32
  }
  func.func @transform_1(%arg0: i32) -> (i32, i32) {
    %c0_i32 = arith.constant 0 : i32
    %c0_i32_0 = arith.constant 0 : i32
    return %arg0, %c0_i32 : i32, i32
  }
  func.func @transform_2(%arg0: i32) -> (i32, i32, i32) {
    %c0_i32 = arith.constant 0 : i32
    %c0_i32_0 = arith.constant 0 : i32
    %c0_i32_1 = arith.constant 0 : i32
    return %arg0, %c0_i32, %c0_i32_0 : i32, i32, i32
  }
  func.func @transform_3(%arg0: i32) -> (i32, i32) {
    %c0_i32 = arith.constant 0 : i32
    %c0_i32_0 = arith.constant 0 : i32
    %c0_i32_1 = arith.constant 0 : i32
    return %c0_i32, %c0_i32_0 : i32, i32
  }
  func.func @transform_4(%arg0: i32) -> (i32, i32) {
    %c0_i32 = arith.constant 0 : i32
    %c0_i32_0 = arith.constant 0 : i32
    %c0_i32_1 = arith.constant 0 : i32
    return %c0_i32, %c0_i32_0 : i32, i32
  }
  func.func @transform_5(%arg0: i32) -> (i32, i32) {
    %c0_i32 = arith.constant 0 : i32
    %c0_i32_0 = arith.constant 0 : i32
    %c0_i32_1 = arith.constant 0 : i32
    return %c0_i32, %c0_i32_0 : i32, i32
  }
  func.func @transform_6(%arg0: i32) -> (i32, i32) {
    %c0_i32 = arith.constant 0 : i32
    %c0_i32_0 = arith.constant 0 : i32
    %c0_i32_1 = arith.constant 0 : i32
    return %c0_i32, %c0_i32_0 : i32, i32
  }
  func.func @transform_7(%arg0: i32) -> (i32, i32) {
    %c0_i32 = arith.constant 0 : i32
    %c0_i32_0 = arith.constant 0 : i32
    %c0_i32_1 = arith.constant 0 : i32
    return %c0_i32, %c0_i32_0 : i32, i32
  }
  func.func @transform_8(%arg0: i32) -> (i32, i32) {
    %c0_i32 = arith.constant 0 : i32
    %c0_i32_0 = arith.constant 0 : i32
    %c0_i32_1 = arith.constant 0 : i32
    return %c0_i32, %c0_i32_0 : i32, i32
  }
  func.func @transform_9(%arg0: i32) -> (i32, i32) {
    %c0_i32 = arith.constant 0 : i32
    %c0_i32_0 = arith.constant 0 : i32
    %c0_i32_1 = arith.constant 0 : i32
    return %c0_i32, %c0_i32_0 : i32, i32
  }
  func.func @transform_10(%arg0: i32) -> (i32, i32) {
    %c0_i32 = arith.constant 0 : i32
    %c0_i32_0 = arith.constant 0 : i32
    %c0_i32_1 = arith.constant 0 : i32
    return %c0_i32, %c0_i32_0 : i32, i32
  }
  func.func @transform_11(%arg0: i32) -> (i32, i32) {
    %c0_i32 = arith.constant 0 : i32
    %c0_i32_0 = arith.constant 0 : i32
    %c0_i32_1 = arith.constant 0 : i32
    return %c0_i32, %c0_i32_0 : i32, i32
  }
  func.func @transform_12(%arg0: i32) -> (i32, i32) {
    %c0_i32 = arith.constant 0 : i32
    %c0_i32_0 = arith.constant 0 : i32
    %c0_i32_1 = arith.constant 0 : i32
    return %c0_i32, %c0_i32_0 : i32, i32
  }
  func.func @transform_13(%arg0: i32) -> (i32, i32) {
    %c0_i32 = arith.constant 0 : i32
    %c0_i32_0 = arith.constant 0 : i32
    return %arg0, %c0_i32 : i32, i32
  }
  func.func @transform_14(%arg0: i32) -> (i32, i32) {
    %c0_i32 = arith.constant 0 : i32
    %c0_i32_0 = arith.constant 0 : i32
    return %arg0, %c0_i32 : i32, i32
  }
  func.func @transform_15(%arg0: i32) -> (i32, i32) {
    %c0_i32 = arith.constant 0 : i32
    %c0_i32_0 = arith.constant 0 : i32
    return %arg0, %c0_i32 : i32, i32
  }
  func.func @transform_16(%arg0: i32) -> (i32, i32) {
    %c0_i32 = arith.constant 0 : i32
    %c0_i32_0 = arith.constant 0 : i32
    return %arg0, %c0_i32 : i32, i32
  }
}

</mosaic_0001>

<llo_original>
// kernel: tpu_custom_call.1
$region0: #{tpu_custom_call.1}
  #allocation0 [shape = 'u32[]', space=smem, size = 0x4, offset = 0x4, fixed_abs, tag = 'smem constant byte address 0x4 - core index']
  #allocation1 [shape = 'u32[144,128]{1,0:T(1,128)}', space=vmem, size = 0x12000, scoped, tag = 'internal scratch']
  %s0 = inlined_call_operand.vmem [shape: f32[64,32], index: 0, kind: input, shape index: {}]
  %s1 = inlined_call_operand.hbm [shape: f32[16,32], index: 1, kind: input, shape index: {}]
  %s2 = inlined_call_operand.vmem [shape: f32[2,32,256], index: 2, kind: input, shape index: {}]
  %s3 = inlined_call_operand.vmem [shape: f32[32,32], index: 3, kind: input, shape index: {}]
  %s4 = inlined_call_operand.vmem [shape: f32[32,1], index: 4, kind: input, shape index: {}]
  %s5 = inlined_call_operand.vmem [shape: f32[32,32], index: 5, kind: input, shape index: {}]
  %s6 = inlined_call_operand.vmem [shape: f32[1,32], index: 6, kind: input, shape index: {}]
  %s7 = inlined_call_operand.vmem [shape: f32[32,32], index: 7, kind: input, shape index: {}]
  %s8 = inlined_call_operand.vmem [shape: f32[1,32], index: 8, kind: input, shape index: {}]
  %s9 = inlined_call_operand.vmem [shape: f32[32,3], index: 9, kind: input, shape index: {}]
  %s10 = inlined_call_operand.vmem [shape: f32[1,3], index: 10, kind: input, shape index: {}]
  %s11 = inlined_call_operand.vmem [shape: f32[32,4], index: 11, kind: input, shape index: {}]
  %s12 = inlined_call_operand.vmem [shape: f32[1,4], index: 12, kind: input, shape index: {}]
  %s13 = inlined_call_operand.hbm [shape: f32[64,256], index: 13, kind: output, shape index: {0}]
  %s14 = inlined_call_operand.hbm [shape: f32[16,256], index: 14, kind: output, shape index: {1}]
  %s15 = inlined_call_operand.vmem [shape: f32[64,3], index: 15, kind: output, shape index: {2}]
  %s16 = inlined_call_operand.vmem [shape: f32[16,4], index: 16, kind: output, shape index: {3}]
  %17 = xla_tuple %s13, %s14, %s15, %s16
  %s18 = sld [smem:[#allocation0]]
  $region113: #{tpu_custom_call.1} parent=0
    _
  %s20 = ssub.s32 1, %s18
  %s21 = scalar_select 0, %s20, %s18
  $region1: #{tpu_custom_call.1} parent=0
    #allocation2 [shape = 'u8[8192]{0}', space=vmem, size = 0x2000, scoped, tag = 'input window, operand 1']
    #allocation3 [shape = 's32[2]{0}', space=sflag, size = 0x8, scoped, tag = 'scoped memory for tpu_custom_call.1']
    #allocation4 [shape = 's32[2]{0}', space=sflag, size = 0x8, scoped, tag = 'scoped memory for tpu_custom_call.1']
    #allocation5 [shape = 'u8[65536]{0}', space=vmem, size = 0x10000, scoped, tag = 'output window, operand 0']
    #allocation6 [shape = 'u8[16384]{0}', space=vmem, size = 0x4000, scoped, tag = 'output window, operand 1']
    #allocation7 [shape = 's32[2]{0}', space=sflag, size = 0x8, scoped, tag = 'scoped memory for tpu_custom_call.1']
    %22 = vsyncpa [#allocation3], 0
    %s23 = scalar_lea.sflag [#allocation3], 1
    %24 = vsyncpa %s23, 0
    %25 = vsyncpa [#allocation4], 0
    %s26 = scalar_lea.sflag [#allocation4], 1
    %27 = vsyncpa %s26, 0
    %28 = vsyncpa [#allocation7], 0
    %s29 = scalar_lea.sflag [#allocation7], 1
    %30 = vsyncpa %s29, 0
    loop: start=0, step=1, limit=4
    $region2: #{tpu_custom_call.1} parent=1 // loop_pre_header
      _
    $region3: #{tpu_custom_call.1} parent=1 // loop_header
      %s32 = sphi 0, %s36
      %p33 = scmp.ge.s32.totalorder %s32, 4
      %s42 = sphi 0, %s44
      %s45 = sphi 0, %s42
      %s46 = sphi 0, %s45
      %s62 = sphi 0, %s46
      %s68 = sphi 0, %s70
      %s71 = sphi 0, %s68
      %s72 = sphi 0, %s71
      %s88 = sphi 0, %s72
      %s94 = sphi 0, %s96
      %s97 = sphi 0, %s94
      %s98 = sphi 0, %s97
      %s114 = sphi 0, %s98
      %s118 = sphi 0, %s118
      %s120 = sphi 0, %s118
      %s121 = sphi 0, %s120
      %s135 = sphi 0, %s121
      %s139 = sphi 0, %s139
      %s141 = sphi 0, %s139
      %s142 = sphi 0, %s141
      %s156 = sphi 0, %s142
      %s160 = sphi 0, %s160
      %s162 = sphi 0, %s160
      %s163 = sphi 0, %s162
      %s177 = sphi 0, %s163
      %s181 = sphi 0, %s181
      %s183 = sphi 0, %s181
      %s184 = sphi 0, %s183
      %s198 = sphi 0, %s184
      %s202 = sphi 0, %s202
      %s204 = sphi 0, %s202
      %s205 = sphi 0, %s204
      %s219 = sphi 0, %s205
      %s223 = sphi 0, %s223
      %s225 = sphi 0, %s223
      %s226 = sphi 0, %s225
      %s240 = sphi 0, %s226
      %s244 = sphi 0, %s244
      %s246 = sphi 0, %s244
      %s247 = sphi 0, %s246
      %s261 = sphi 0, %s247
      %s265 = sphi 0, %s265
      %s267 = sphi 0, %s265
      %s268 = sphi 0, %s267
      %s282 = sphi 0, %s268
      %s286 = sphi 0, %s286
      %s288 = sphi 0, %s286
      %s289 = sphi 0, %s288
      %s303 = sphi 0, %s289
      %s307 = sphi 0, %s307
      %s309 = sphi 0, %s307
      %s310 = sphi 0, %s309
      %s324 = sphi 0, %s310
      %s330 = sphi 0, %s332
      %s333 = sphi 0, %s330
      %s334 = sphi 0, %s333
      %s350 = sphi 0, %s334
      %s356 = sphi 0, %s358
      %s359 = sphi 0, %s356
      %s360 = sphi 0, %s359
      %s376 = sphi 0, %s360
      %s382 = sphi 0, %s384
      %s385 = sphi 0, %s382
      %s386 = sphi 0, %s385
      %s402 = sphi 0, %s386
      %s408 = sphi 0, %s410
      %s411 = sphi 0, %s408
      %s412 = sphi 0, %s411
      %s428 = sphi 0, %s412
    $region4: #{tpu_custom_call.1} parent=1 // loop_header_branch
      %35 = sbr.rel (%p33) target = $region8
    $region5: #{tpu_custom_call.1} parent=1 // loop_body
      %s37 = ssub.s32 %s32, 1
      %s38 = ssub.s32 %s32, 2
      %s39 = sadd.s32 %s32, 1
      %s40 = ssub.s32 %s32, %s39
      %p41 = scmp.eq.s32.totalorder %s40, 0
      %s43 = sadd.s32 %s42, 1
      %s44 = scalar_select %p41, %s42, %s43
      %p47 = pneg %p41
      %p48 = scmp.eq.s32.totalorder %s32, 1
      %p49 = por %p47, %p48
      %p50 = scmp.ne.s32.totalorder %s42, %s45
      %p51 = scmp.eq.s32.totalorder %s32, 0
      %p52 = por %p50, %p51
      %p53 = scmp.ne.s32.totalorder %s42, %s45
      %p54 = scmp.eq.s32.totalorder %s37, 1
      %p55 = por %p53, %p54
      %p56 = scmp.ne.s32.totalorder %s45, %s46
      %p57 = scmp.eq.s32.totalorder %s37, 0
      %p58 = por %p56, %p57
      %p59 = scmp.ne.s32.totalorder %s45, %s46
      %p60 = scmp.eq.s32.totalorder %s38, 1
      %p61 = por %p59, %p60
      %p63 = scmp.ne.s32.totalorder %s46, %s62
      %p64 = scmp.eq.s32.totalorder %s38, 0
      %p65 = por %p63, %p64
      %s66 = ssub.s32 %s32, %s39
      %p67 = scmp.eq.s32.totalorder %s66, 0
      %s69 = sadd.s32 %s68, 1
      %s70 = scalar_select %p67, %s68, %s69
      %p73 = pneg %p67
      %p74 = scmp.eq.s32.totalorder %s32, 1
      %p75 = por %p73, %p74
      %p76 = scmp.ne.s32.totalorder %s68, %s71
      %p77 = scmp.eq.s32.totalorder %s32, 0
      %p78 = por %p76, %p77
      %p79 = scmp.ne.s32.totalorder %s68, %s71
      %p80 = scmp.eq.s32.totalorder %s37, 1
      %p81 = por %p79, %p80
      %p82 = scmp.ne.s32.totalorder %s71, %s72
      %p83 = scmp.eq.s32.totalorder %s37, 0
      %p84 = por %p82, %p83
      %p85 = scmp.ne.s32.totalorder %s71, %s72
      %p86 = scmp.eq.s32.totalorder %s38, 1
      %p87 = por %p85, %p86
      %p89 = scmp.ne.s32.totalorder %s72, %s88
      %p90 = scmp.eq.s32.totalorder %s38, 0
      %p91 = por %p89, %p90
      %s92 = ssub.s32 %s32, %s39
      %p93 = scmp.eq.s32.totalorder %s92, 0
      %s95 = sadd.s32 %s94, 1
      %s96 = scalar_select %p93, %s94, %s95
      %p99 = pneg %p93
      %p100 = scmp.eq.s32.totalorder %s32, 1
      %p101 = por %p99, %p100
      %p102 = scmp.ne.s32.totalorder %s94, %s97
      %p103 = scmp.eq.s32.totalorder %s32, 0
      %p104 = por %p102, %p103
      %p105 = scmp.ne.s32.totalorder %s94, %s97
      %p106 = scmp.eq.s32.totalorder %s37, 1
      %p107 = por %p105, %p106
      %p108 = scmp.ne.s32.totalorder %s97, %s98
      %p109 = scmp.eq.s32.totalorder %s37, 0
      %p110 = por %p108, %p109
      %p111 = scmp.ne.s32.totalorder %s97, %s98
      %p112 = scmp.eq.s32.totalorder %s38, 1
      %p113 = por %p111, %p112
      %p115 = scmp.ne.s32.totalorder %s98, %s114
      %p116 = scmp.eq.s32.totalorder %s38, 0
      %p117 = por %p115, %p116
      %s119 = sadd.s32 %s118, 1
      %p122 = scmp.eq.s32.totalorder %s32, 1
      %p123 = scmp.ne.s32.totalorder %s118, %s120
      %p124 = scmp.eq.s32.totalorder %s32, 0
      %p125 = por %p123, %p124
      %p126 = scmp.ne.s32.totalorder %s118, %s120
      %p127 = scmp.eq.s32.totalorder %s37, 1
      %p128 = por %p126, %p127
      %p129 = scmp.ne.s32.totalorder %s120, %s121
      %p130 = scmp.eq.s32.totalorder %s37, 0
      %p131 = por %p129, %p130
      %p132 = scmp.ne.s32.totalorder %s120, %s121
      %p133 = scmp.eq.s32.totalorder %s38, 1
      %p134 = por %p132, %p133
      %p136 = scmp.ne.s32.totalorder %s121, %s135
      %p137 = scmp.eq.s32.totalorder %s38, 0
      %p138 = por %p136, %p137
      %s140 = sadd.s32 %s139, 1
      %p143 = scmp.eq.s32.totalorder %s32, 1
      %p144 = scmp.ne.s32.totalorder %s139, %s141
      %p145 = scmp.eq.s32.totalorder %s32, 0
      %p146 = por %p144, %p145
      %p147 = scmp.ne.s32.totalorder %s139, %s141
      %p148 = scmp.eq.s32.totalorder %s37, 1
      %p149 = por %p147, %p148
      %p150 = scmp.ne.s32.totalorder %s141, %s142
      %p151 = scmp.eq.s32.totalorder %s37, 0
      %p152 = por %p150, %p151
      %p153 = scmp.ne.s32.totalorder %s141, %s142
      %p154 = scmp.eq.s32.totalorder %s38, 1
      %p155 = por %p153, %p154
      %p157 = scmp.ne.s32.totalorder %s142, %s156
      %p158 = scmp.eq.s32.totalorder %s38, 0
      %p159 = por %p157, %p158
      %s161 = sadd.s32 %s160, 1
      %p164 = scmp.eq.s32.totalorder %s32, 1
      %p165 = scmp.ne.s32.totalorder %s160, %s162
      %p166 = scmp.eq.s32.totalorder %s32, 0
      %p167 = por %p165, %p166
      %p168 = scmp.ne.s32.totalorder %s160, %s162
      %p169 = scmp.eq.s32.totalorder %s37, 1
      %p170 = por %p168, %p169
      %p171 = scmp.ne.s32.totalorder %s162, %s163
      %p172 = scmp.eq.s32.totalorder %s37, 0
      %p173 = por %p171, %p172
      %p174 = scmp.ne.s32.totalorder %s162, %s163
      %p175 = scmp.eq.s32.totalorder %s38, 1
      %p176 = por %p174, %p175
      %p178 = scmp.ne.s32.totalorder %s163, %s177
      %p179 = scmp.eq.s32.totalorder %s38, 0
      %p180 = por %p178, %p179
      %s182 = sadd.s32 %s181, 1
      %p185 = scmp.eq.s32.totalorder %s32, 1
      %p186 = scmp.ne.s32.totalorder %s181, %s183
      %p187 = scmp.eq.s32.totalorder %s32, 0
      %p188 = por %p186, %p187
      %p189 = scmp.ne.s32.totalorder %s181, %s183
      %p190 = scmp.eq.s32.totalorder %s37, 1
      %p191 = por %p189, %p190
      %p192 = scmp.ne.s32.totalorder %s183, %s184
      %p193 = scmp.eq.s32.totalorder %s37, 0
      %p194 = por %p192, %p193
      %p195 = scmp.ne.s32.totalorder %s183, %s184
      %p196 = scmp.eq.s32.totalorder %s38, 1
      %p197 = por %p195, %p196
      %p199 = scmp.ne.s32.totalorder %s184, %s198
      %p200 = scmp.eq.s32.totalorder %s38, 0
      %p201 = por %p199, %p200
      %s203 = sadd.s32 %s202, 1
      %p206 = scmp.eq.s32.totalorder %s32, 1
      %p207 = scmp.ne.s32.totalorder %s202, %s204
      %p208 = scmp.eq.s32.totalorder %s32, 0
      %p209 = por %p207, %p208
      %p210 = scmp.ne.s32.totalorder %s202, %s204
      %p211 = scmp.eq.s32.totalorder %s37, 1
      %p212 = por %p210, %p211
      %p213 = scmp.ne.s32.totalorder %s204, %s205
      %p214 = scmp.eq.s32.totalorder %s37, 0
      %p215 = por %p213, %p214
      %p216 = scmp.ne.s32.totalorder %s204, %s205
      %p217 = scmp.eq.s32.totalorder %s38, 1
      %p218 = por %p216, %p217
      %p220 = scmp.ne.s32.totalorder %s205, %s219
      %p221 = scmp.eq.s32.totalorder %s38, 0
      %p222 = por %p220, %p221
      %s224 = sadd.s32 %s223, 1
      %p227 = scmp.eq.s32.totalorder %s32, 1
      %p228 = scmp.ne.s32.totalorder %s223, %s225
      %p229 = scmp.eq.s32.totalorder %s32, 0
      %p230 = por %p228, %p229
      %p231 = scmp.ne.s32.totalorder %s223, %s225
      %p232 = scmp.eq.s32.totalorder %s37, 1
      %p233 = por %p231, %p232
      %p234 = scmp.ne.s32.totalorder %s225, %s226
      %p235 = scmp.eq.s32.totalorder %s37, 0
      %p236 = por %p234, %p235
      %p237 = scmp.ne.s32.totalorder %s225, %s226
      %p238 = scmp.eq.s32.totalorder %s38, 1
      %p239 = por %p237, %p238
      %p241 = scmp.ne.s32.totalorder %s226, %s240
      %p242 = scmp.eq.s32.totalorder %s38, 0
      %p243 = por %p241, %p242
      %s245 = sadd.s32 %s244, 1
      %p248 = scmp.eq.s32.totalorder %s32, 1
      %p249 = scmp.ne.s32.totalorder %s244, %s246
      %p250 = scmp.eq.s32.totalorder %s32, 0
      %p251 = por %p249, %p250
      %p252 = scmp.ne.s32.totalorder %s244, %s246
      %p253 = scmp.eq.s32.totalorder %s37, 1
      %p254 = por %p252, %p253
      %p255 = scmp.ne.s32.totalorder %s246, %s247
      %p256 = scmp.eq.s32.totalorder %s37, 0
      %p257 = por %p255, %p256
      %p258 = scmp.ne.s32.totalorder %s246, %s247
      %p259 = scmp.eq.s32.totalorder %s38, 1
      %p260 = por %p258, %p259
      %p262 = scmp.ne.s32.totalorder %s247, %s261
      %p263 = scmp.eq.s32.totalorder %s38, 0
      %p264 = por %p262, %p263
      %s266 = sadd.s32 %s265, 1
      %p269 = scmp.eq.s32.totalorder %s32, 1
      %p270 = scmp.ne.s32.totalorder %s265, %s267
      %p271 = scmp.eq.s32.totalorder %s32, 0
      %p272 = por %p270, %p271
      %p273 = scmp.ne.s32.totalorder %s265, %s267
      %p274 = scmp.eq.s32.totalorder %s37, 1
      %p275 = por %p273, %p274
      %p276 = scmp.ne.s32.totalorder %s267, %s268
      %p277 = scmp.eq.s32.totalorder %s37, 0
      %p278 = por %p276, %p277
      %p279 = scmp.ne.s32.totalorder %s267, %s268
      %p280 = scmp.eq.s32.totalorder %s38, 1
      %p281 = por %p279, %p280
      %p283 = scmp.ne.s32.totalorder %s268, %s282
      %p284 = scmp.eq.s32.totalorder %s38, 0
      %p285 = por %p283, %p284
      %s287 = sadd.s32 %s286, 1
      %p290 = scmp.eq.s32.totalorder %s32, 1
      %p291 = scmp.ne.s32.totalorder %s286, %s288
      %p292 = scmp.eq.s32.totalorder %s32, 0
      %p293 = por %p291, %p292
      %p294 = scmp.ne.s32.totalorder %s286, %s288
      %p295 = scmp.eq.s32.totalorder %s37, 1
      %p296 = por %p294, %p295
      %p297 = scmp.ne.s32.totalorder %s288, %s289
      %p298 = scmp.eq.s32.totalorder %s37, 0
      %p299 = por %p297, %p298
      %p300 = scmp.ne.s32.totalorder %s288, %s289
      %p301 = scmp.eq.s32.totalorder %s38, 1
      %p302 = por %p300, %p301
      %p304 = scmp.ne.s32.totalorder %s289, %s303
      %p305 = scmp.eq.s32.totalorder %s38, 0
      %p306 = por %p304, %p305
      %s308 = sadd.s32 %s307, 1
      %p311 = scmp.eq.s32.totalorder %s32, 1
      %p312 = scmp.ne.s32.totalorder %s307, %s309
      %p313 = scmp.eq.s32.totalorder %s32, 0
      %p314 = por %p312, %p313
      %p315 = scmp.ne.s32.totalorder %s307, %s309
      %p316 = scmp.eq.s32.totalorder %s37, 1
      %p317 = por %p315, %p316
      %p318 = scmp.ne.s32.totalorder %s309, %s310
      %p319 = scmp.eq.s32.totalorder %s37, 0
      %p320 = por %p318, %p319
      %p321 = scmp.ne.s32.totalorder %s309, %s310
      %p322 = scmp.eq.s32.totalorder %s38, 1
      %p323 = por %p321, %p322
      %p325 = scmp.ne.s32.totalorder %s310, %s324
      %p326 = scmp.eq.s32.totalorder %s38, 0
      %p327 = por %p325, %p326
      %s328 = ssub.s32 %s32, %s39
      %p329 = scmp.eq.s32.totalorder %s328, 0
      %s331 = sadd.s32 %s330, 1
      %s332 = scalar_select %p329, %s330, %s331
      %p335 = pneg %p329
      %p336 = scmp.eq.s32.totalorder %s32, 1
      %p337 = por %p335, %p336
      %p338 = scmp.ne.s32.totalorder %s330, %s333
      %p339 = scmp.eq.s32.totalorder %s32, 0
      %p340 = por %p338, %p339
      %p341 = scmp.ne.s32.totalorder %s330, %s333
      %p342 = scmp.eq.s32.totalorder %s37, 1
      %p343 = por %p341, %p342
      %p344 = scmp.ne.s32.totalorder %s333, %s334
      %p345 = scmp.eq.s32.totalorder %s37, 0
      %p346 = por %p344, %p345
      %p347 = scmp.ne.s32.totalorder %s333, %s334
      %p348 = scmp.eq.s32.totalorder %s38, 1
      %p349 = por %p347, %p348
      %p351 = scmp.ne.s32.totalorder %s334, %s350
      %p352 = scmp.eq.s32.totalorder %s38, 0
      %p353 = por %p351, %p352
      %s354 = ssub.s32 %s32, %s39
      %p355 = scmp.eq.s32.totalorder %s354, 0
      %s357 = sadd.s32 %s356, 1
      %s358 = scalar_select %p355, %s356, %s357
      %p361 = pneg %p355
      %p362 = scmp.eq.s32.totalorder %s32, 1
      %p363 = por %p361, %p362
      %p364 = scmp.ne.s32.totalorder %s356, %s359
      %p365 = scmp.eq.s32.totalorder %s32, 0
      %p366 = por %p364, %p365
      %p367 = scmp.ne.s32.totalorder %s356, %s359
      %p368 = scmp.eq.s32.totalorder %s37, 1
      %p369 = por %p367, %p368
      %p370 = scmp.ne.s32.totalorder %s359, %s360
      %p371 = scmp.eq.s32.totalorder %s37, 0
      %p372 = por %p370, %p371
      %p373 = scmp.ne.s32.totalorder %s359, %s360
      %p374 = scmp.eq.s32.totalorder %s38, 1
      %p375 = por %p373, %p374
      %p377 = scmp.ne.s32.totalorder %s360, %s376
      %p378 = scmp.eq.s32.totalorder %s38, 0
      %p379 = por %p377, %p378
      %s380 = ssub.s32 %s32, %s39
      %p381 = scmp.eq.s32.totalorder %s380, 0
      %s383 = sadd.s32 %s382, 1
      %s384 = scalar_select %p381, %s382, %s383
      %p387 = pneg %p381
      %p388 = scmp.eq.s32.totalorder %s32, 1
      %p389 = por %p387, %p388
      %p390 = scmp.ne.s32.totalorder %s382, %s385
      %p391 = scmp.eq.s32.totalorder %s32, 0
      %p392 = por %p390, %p391
      %p393 = scmp.ne.s32.totalorder %s382, %s385
      %p394 = scmp.eq.s32.totalorder %s37, 1
      %p395 = por %p393, %p394
      %p396 = scmp.ne.s32.totalorder %s385, %s386
      %p397 = scmp.eq.s32.totalorder %s37, 0
      %p398 = por %p396, %p397
      %p399 = scmp.ne.s32.totalorder %s385, %s386
      %p400 = scmp.eq.s32.totalorder %s38, 1
      %p401 = por %p399, %p400
      %p403 = scmp.ne.s32.totalorder %s386, %s402
      %p404 = scmp.eq.s32.totalorder %s38, 0
      %p405 = por %p403, %p404
      %s406 = ssub.s32 %s32, %s39
      %p407 = scmp.eq.s32.totalorder %s406, 0
      %s409 = sadd.s32 %s408, 1
      %s410 = scalar_select %p407, %s408, %s409
      %p413 = pneg %p407
      %p414 = scmp.eq.s32.totalorder %s32, 1
      %p415 = por %p413, %p414
      %p416 = scmp.ne.s32.totalorder %s408, %s411
      %p417 = scmp.eq.s32.totalorder %s32, 0
      %p418 = por %p416, %p417
      %p419 = scmp.ne.s32.totalorder %s408, %s411
      %p420 = scmp.eq.s32.totalorder %s37, 1
      %p421 = por %p419, %p420
      %p422 = scmp.ne.s32.totalorder %s411, %s412
      %p423 = scmp.eq.s32.totalorder %s37, 0
      %p424 = por %p422, %p423
      %p425 = scmp.ne.s32.totalorder %s411, %s412
      %p426 = scmp.eq.s32.totalorder %s38, 1
      %p427 = por %p425, %p426
      %p429 = scmp.ne.s32.totalorder %s412, %s428
      %p430 = scmp.eq.s32.totalorder %s38, 0
      %p431 = por %p429, %p430
      %p432 = scmp.le.s32.totalorder 1, %s32
      %p433 = scmp.lt.s32.totalorder %s32, 3
      %p434 = pnand %p432, %p433
      %p435 = pneg %p434
      // Predicated region
      $region9: #{tpu_custom_call.1} parent=5 // pred_check
        _
      $region10: #{tpu_custom_call.1} parent=5 // pred_check_branch
        %437 = sbr.rel (%p434) target = $region12
      $region11: #{tpu_custom_call.1} parent=5 // pred_region
        %s438 = ssub.s32 %s32, 1
        // Predicated region
        $region13: #{tpu_custom_call.1} parent=11 // pred_check
          %p439 = pneg %p131
        $region14: #{tpu_custom_call.1} parent=11 // pred_check_branch
          %441 = sbr.rel (%p439) target = $region16
        $region15: #{tpu_custom_call.1} parent=11 // pred_region
          _
        $region16: #{tpu_custom_call.1} parent=11 // pred_fallthru
          _
        // Predicated region
        $region17: #{tpu_custom_call.1} parent=11 // pred_check
          %p442 = pneg %p152
        $region18: #{tpu_custom_call.1} parent=11 // pred_check_branch
          %444 = sbr.rel (%p442) target = $region20
        $region19: #{tpu_custom_call.1} parent=11 // pred_region
          _
        $region20: #{tpu_custom_call.1} parent=11 // pred_fallthru
          _
        // Predicated region
        $region21: #{tpu_custom_call.1} parent=11 // pred_check
          %p445 = pneg %p173
        $region22: #{tpu_custom_call.1} parent=11 // pred_check_branch
          %447 = sbr.rel (%p445) target = $region24
        $region23: #{tpu_custom_call.1} parent=11 // pred_region
          _
        $region24: #{tpu_custom_call.1} parent=11 // pred_fallthru
          _
        // Predicated region
        $region25: #{tpu_custom_call.1} parent=11 // pred_check
          %p448 = pneg %p194
        $region26: #{tpu_custom_call.1} parent=11 // pred_check_branch
          %450 = sbr.rel (%p448) target = $region28
        $region27: #{tpu_custom_call.1} parent=11 // pred_region
          _
        $region28: #{tpu_custom_call.1} parent=11 // pred_fallthru
          _
        // Predicated region
        $region29: #{tpu_custom_call.1} parent=11 // pred_check
          %p451 = pneg %p215
        $region30: #{tpu_custom_call.1} parent=11 // pred_check_branch
          %453 = sbr.rel (%p451) target = $region32
        $region31: #{tpu_custom_call.1} parent=11 // pred_region
          _
        $region32: #{tpu_custom_call.1} parent=11 // pred_fallthru
          _
        // Predicated region
        $region33: #{tpu_custom_call.1} parent=11 // pred_check
          %p454 = pneg %p236
        $region34: #{tpu_custom_call.1} parent=11 // pred_check_branch
          %456 = sbr.rel (%p454) target = $region36
        $region35: #{tpu_custom_call.1} parent=11 // pred_region
          _
        $region36: #{tpu_custom_call.1} parent=11 // pred_fallthru
          _
        // Predicated region
        $region37: #{tpu_custom_call.1} parent=11 // pred_check
          %p457 = pneg %p257
        $region38: #{tpu_custom_call.1} parent=11 // pred_check_branch
          %459 = sbr.rel (%p457) target = $region40
        $region39: #{tpu_custom_call.1} parent=11 // pred_region
          _
        $region40: #{tpu_custom_call.1} parent=11 // pred_fallthru
          _
        // Predicated region
        $region41: #{tpu_custom_call.1} parent=11 // pred_check
          %p460 = pneg %p278
        $region42: #{tpu_custom_call.1} parent=11 // pred_check_branch
          %462 = sbr.rel (%p460) target = $region44
        $region43: #{tpu_custom_call.1} parent=11 // pred_region
          _
        $region44: #{tpu_custom_call.1} parent=11 // pred_fallthru
          _
        // Predicated region
        $region45: #{tpu_custom_call.1} parent=11 // pred_check
          %p463 = pneg %p299
        $region46: #{tpu_custom_call.1} parent=11 // pred_check_branch
          %465 = sbr.rel (%p463) target = $region48
        $region47: #{tpu_custom_call.1} parent=11 // pred_region
          _
        $region48: #{tpu_custom_call.1} parent=11 // pred_fallthru
          _
        // Predicated region
        $region49: #{tpu_custom_call.1} parent=11 // pred_check
          %p466 = pneg %p320
        $region50: #{tpu_custom_call.1} parent=11 // pred_check_branch
          %468 = sbr.rel (%p466) target = $region52
        $region51: #{tpu_custom_call.1} parent=11 // pred_region
          _
        $region52: #{tpu_custom_call.1} parent=11 // pred_fallthru
          _
      $region12: #{tpu_custom_call.1} parent=5 // pred_fallthru
        _
      %p469 = scmp.lt.s32.totalorder %s32, 2
      // Predicated region
      $region53: #{tpu_custom_call.1} parent=5 // pred_check
        %p470 = pneg %p469
      $region54: #{tpu_custom_call.1} parent=5 // pred_check_branch
        %472 = sbr.rel (%p470) target = $region56
      $region55: #{tpu_custom_call.1} parent=5 // pred_region
        // Predicated region
        $region57: #{tpu_custom_call.1} parent=55 // pred_check
          %p473 = pneg %p52
        $region58: #{tpu_custom_call.1} parent=55 // pred_check_branch
          %475 = sbr.rel (%p473) target = $region60
        $region59: #{tpu_custom_call.1} parent=55 // pred_region
          %s476 = smul.u32 4, %s32
          %p477 = scmp.lt.s32.totalorder %s476, 7
          %s478 = scalar_select %p477, %s476, 7
          %s479 = smul.addr %s478, 8
          %s480 = scalar_lea.vmem %s0, %s479
          %s481 = smul.u32 4, %s32
        $region60: #{tpu_custom_call.1} parent=55 // pred_fallthru
          _
        // Predicated region
        $region61: #{tpu_custom_call.1} parent=55 // pred_check
          %p482 = pneg %p78
        $region62: #{tpu_custom_call.1} parent=55 // pred_check_branch
          %484 = sbr.rel (%p482) target = $region64
        $region63: #{tpu_custom_call.1} parent=55 // pred_region
          %s485 = sand.u32 %s68, 1
          %s486 = scalar_lea.sflag [#allocation3], %s485
          %s487 = sand.u32 %s68, 1
          %s488 = smul.addr %s487, 8
          %s489 = scalar_lea.vmem [#allocation2], %s488
          %s491 = ssub.s32 128, 128
          %492 = vsyncadd %s486, %s491
          %s493 = smul.addr %s32, 128
          %s494 = scalar_lea.hbm %s1, %s493
          %s496 = sshll.u32 %s489, 4
          %s497 = int_to_ptr.vmem [resolvable:$true] %s496
          %499 = dma.hbm_to_vmem [thread:$0]  %s494, 128, %s497, %s486
        $region64: #{tpu_custom_call.1} parent=55 // pred_fallthru
          _
        // Predicated region
        $region65: #{tpu_custom_call.1} parent=55 // pred_check
          %p500 = pneg %p104
        $region66: #{tpu_custom_call.1} parent=55 // pred_check_branch
          %502 = sbr.rel (%p500) target = $region68
        $region67: #{tpu_custom_call.1} parent=55 // pred_region
          %p503 = scmp.lt.s32.totalorder %s32, 1
          %s504 = scalar_select %p503, %s32, 1
          %s505 = smul.addr %s504, 8
          %s506 = smul.addr %s505, 8
          %s507 = scalar_lea.vmem %s2, %s506
        $region68: #{tpu_custom_call.1} parent=55 // pred_fallthru
          _
      $region56: #{tpu_custom_call.1} parent=5 // pred_fallthru
        _
      %p508 = scmp.le.s32.totalorder 1, %s32
      %p509 = scmp.lt.s32.totalorder %s32, 3
      %p510 = pnand %p508, %p509
      %p511 = pneg %p510
      // Predicated region
      $region69: #{tpu_custom_call.1} parent=5 // pred_check
        _
      $region70: #{tpu_custom_call.1} parent=5 // pred_check_branch
        %513 = sbr.rel (%p510) target = $region72
      $region71: #{tpu_custom_call.1} parent=5 // pred_region
        %s514 = ssub.s32 %s32, 1
        %s515 = sand.u32 %s71, 1
        %s516 = scalar_lea.sflag [#allocation3], %s515
        %s517 = sand.u32 %s71, 1
        %s518 = smul.addr %s517, 8
        %s519 = scalar_lea.vmem [#allocation2], %s518
        // Predicated region
        $region73: #{tpu_custom_call.1} parent=71 // pred_check
          %p520 = pneg %p84
        $region74: #{tpu_custom_call.1} parent=71 // pred_check_branch
          %522 = sbr.rel (%p520) target = $region76
        $region75: #{tpu_custom_call.1} parent=71 // pred_region
          %523 = dma.done %s516, 128
        $region76: #{tpu_custom_call.1} parent=71 // pred_fallthru
          _
        %s524 = smul.u32 4, %s37
        %p525 = scmp.lt.s32.totalorder %s524, 7
        %s526 = scalar_select %p525, %s524, 7
        %s527 = smul.addr %s526, 8
        %s528 = scalar_lea.vmem %s0, %s527
        %p529 = pneg %p58
        %p530 = pneg %p55
        %s531 = sand.u32 %s71, 1
        %s532 = scalar_lea.sflag [#allocation3], %s531
        %s533 = sand.u32 %s71, 1
        %s534 = smul.addr %s533, 8
        %s535 = scalar_lea.vmem [#allocation2], %s534
        %p536 = pneg %p84
        %p537 = pneg %p81
        %p538 = scmp.lt.s32.totalorder %s37, 1
        %s539 = scalar_select %p538, %s37, 1
        %s540 = smul.addr %s539, 8
        %s541 = smul.addr %s540, 8
        %s542 = scalar_lea.vmem %s2, %s541
        %p543 = pneg %p110
        %p544 = pneg %p107
        %p545 = pneg %p131
        %p546 = pneg %p128
        %p547 = pneg %p152
        %p548 = pneg %p149
        %p549 = pneg %p173
        %p550 = pneg %p170
        %p551 = pneg %p194
        %p552 = pneg %p191
        %p553 = pneg %p215
        %p554 = pneg %p212
        %p555 = pneg %p236
        %p556 = pneg %p233
        %p557 = pneg %p257
        %p558 = pneg %p254
        %p559 = pneg %p278
        %p560 = pneg %p275
        %p561 = pneg %p299
        %p562 = pneg %p296
        %p563 = pneg %p320
        %p564 = pneg %p317
        %p565 = pneg %p346
        %p566 = pneg %p343
        %s567 = sand.u32 %s333, 1
        %s568 = scalar_lea.sflag [#allocation4], %s567
        %s569 = sand.u32 %s333, 1
        %s570 = smul.addr %s569, 64
        %s571 = scalar_lea.vmem [#allocation5], %s570
        %p572 = pneg %p372
        %p573 = pneg %p369
        %s574 = sand.u32 %s359, 1
        %s575 = scalar_lea.sflag [#allocation7], %s574
        %s576 = sand.u32 %s359, 1
        %s577 = smul.addr %s576, 16
        %s578 = scalar_lea.vmem [#allocation6], %s577
        %p579 = pneg %p398
        %p580 = pneg %p395
        %s581 = smul.u32 4, %s37
        %p582 = scmp.lt.s32.totalorder %s581, 7
        %s583 = scalar_select %p582, %s581, 7
        %s584 = smul.addr %s583, 8
        %s585 = scalar_lea.vmem %s15, %s584
        %p586 = pneg %p424
        %p587 = pneg %p421
        %p588 = scmp.lt.s32.totalorder %s37, 1
        %s589 = scalar_select %p588, %s37, 1
        %s590 = smul.addr %s589, 8
        %s591 = scalar_lea.vmem %s16, %s590
        %s592 = smul.u32 4, %s37
        %p593 = scmp.lt.s32.totalorder %s592, 7
        %s594 = scalar_select %p593, %s592, 7
        %s595 = smul.addr %s594, 8
        %s596 = scalar_lea.vmem %s0, %s595
        %s597 = smul.u32 4, %s37
        %p598 = scmp.lt.s32.totalorder %s37, 1
        %s599 = scalar_select %p598, %s37, 1
        %s600 = smul.addr %s599, 8
        %s601 = smul.addr %s600, 8
        %s602 = scalar_lea.vmem %s2, %s601
        %s603 = smul.u32 4, %s37
        %s604 = smul.u32 4, %s37
        %p605 = scmp.lt.s32.totalorder %s604, 7
        %s606 = scalar_select %p605, %s604, 7
        %s607 = smul.addr %s606, 8
        %s608 = scalar_lea.vmem %s15, %s607
        %s609 = smul.u32 4, %s37
        %p610 = scmp.lt.s32.totalorder %s37, 1
        %s611 = scalar_select %p610, %s37, 1
        %s612 = smul.addr %s611, 8
        %s613 = scalar_lea.vmem %s16, %s612
        %v614 = vld [vmem:[%s596] sm:$0xff]
        %v615 = vld [vmem:[%s596 + $0x8] sm:$0xff]
        %v616 = vld [vmem:[%s596 + $0x10] sm:$0xff]
        %v617 = vld [vmem:[%s596 + $0x18] sm:$0xff]
        %v618 = vld [vmem:[%s5] sm:$0xff]
        %v619 = vld [vmem:[%s5 + $0x8] sm:$0xff]
        %v620 = vld [vmem:[%s5 + $0x10] sm:$0xff]
        %v621 = vld [vmem:[%s5 + $0x18] sm:$0xff]
        %v622 = vld [vmem:[%s6] sm:$0x1]
        %v624 = vlaneseq
        %v625 = vshrl.u32 %v624, 7
        %v626 = vsub.s32 0, %v625
        %v627 = vrot.slane %v622, %v626
        %vm629 = vcmask 261120
        %v631 = vsel %vm629, %v614, 0
        %v634 = vsel %vm629, %v615, 0
        %v637 = vsel %vm629, %v616, 0
        %v640 = vsel %vm629, %v617, 0
        %642 = vmatprep.subr.mxu0 0.0
        %643 = vmatpush1.msra.mxu0 %v618
        %644 = vmatprep.subr.mxu0 0.0
        %645 = vmatpush1.msra.mxu0 %v619
        %646 = vmatprep.subr.mxu0 0.0
        %647 = vmatpush1.msra.mxu0 %v620
        %648 = vmatprep.subr.mxu0 0.0
        %649 = vmatpush1.msra.mxu0 %v621
        %650 = vmatprep.subr.mxu0 0.0
        %651 = vmatpush1.msra.mxu0 0.0
        %652 = vmatprep.subr.mxu0 0.0
        %653 = vmatpush1.msra.mxu0 0.0
        %654 = vmatprep.subr.mxu0 0.0
        %655 = vmatpush1.msra.mxu0 0.0
        %656 = vmatprep.subr.mxu0 0.0
        %657 = vmatpush1.msra.mxu0 0.0
        %658 = vmatprep.subr.mxu0 0.0
        %659 = vmatpush1.msra.mxu0 0.0
        %660 = vmatprep.subr.mxu0 0.0
        %661 = vmatpush1.msra.mxu0 0.0
        %662 = vmatprep.subr.mxu0 0.0
        %663 = vmatpush1.msra.mxu0 0.0
        %664 = vmatprep.subr.mxu0 0.0
        %665 = vmatpush1.msra.mxu0 0.0
        %666 = vmatprep.subr.mxu0 0.0
        %667 = vmatpush1.msra.mxu0 0.0
        %668 = vmatprep.subr.mxu0 0.0
        %669 = vmatpush1.msra.mxu0 0.0
        %670 = vmatprep.subr.mxu0 0.0
        %671 = vmatpush1.msra.mxu0 0.0
        %672 = vmatprep.subr.mxu0 0.0
        %673 = vmatpush1.msra.mxu0 0.0
        %674 = vmatprep.subr.mxu0 0.0
        %675 = vmatpush1.msra.mxu0 0.0
        %676 = vmatprep.subr.mxu0 0.0
        %677 = vmatpush1.msra.mxu0 0.0
        %678 = vmatprep.subr.mxu0 0.0
        %679 = vmatpush1.msra.mxu0 0.0
        %680 = vmatprep.subr.mxu0 0.0
        %681 = vmatpush1.msra.mxu0 0.0
        %682 = vmatprep.subr.mxu0 0.0
        %683 = vmatpush1.msra.mxu0 0.0
        %684 = vmatprep.subr.mxu0 0.0
        %685 = vmatpush1.msra.mxu0 0.0
        %686 = vmatprep.subr.mxu0 0.0
        %687 = vmatpush1.msra.mxu0 0.0
        %688 = vmatprep.subr.mxu0 0.0
        %689 = vmatpush1.msra.mxu0 0.0
        %690 = vmatprep.subr.mxu0 0.0
        %691 = vmatpush1.msra.mxu0 0.0
        %692 = vmatprep.subr.mxu0 0.0
        %693 = vmatpush1.msra.mxu0 0.0
        %694 = vmatprep.subr.mxu0 0.0
        %695 = vmatpush1.msra.mxu0 0.0
        %696 = vmatprep.subr.mxu0 0.0
        %697 = vmatpush1.msra.mxu0 0.0
        %698 = vmatprep.subr.mxu0 0.0
        %699 = vmatpush1.msra.mxu0 0.0
        %700 = vmatprep.subr.mxu0 0.0
        %701 = vmatpush1.msra.mxu0 0.0
        %702 = vmatprep.subr.mxu0 0.0
        %703 = vmatpush1.msra.mxu0 0.0
        %704 = vmatprep.subr.mxu0 0.0
        %705 = vmatpush1.msra.mxu0 0.0
        %706 = vmatprep.mubr.f32.mxu0 0.0
        %707 = vmatmul.mubr.f32.gmra.mrb[0].mxu0 %v631
        %v708 = vpop.f32.mrb[0].mxu0
        %v709 = vadd.f32 %v627, %v708
        %v710 = vpop.f32.mrb[0].mxu0
        %711 = vmatprep.mubr.f32.mxu0 0.0
        %712 = vmatmul.mubr.f32.gmra.mrb[0].mxu0 %v634
        %v713 = vpop.f32.mrb[0].mxu0
        %v714 = vadd.f32 %v627, %v713
        %v715 = vpop.f32.mrb[0].mxu0
        %716 = vmatprep.mubr.f32.mxu0 0.0
        %717 = vmatmul.mubr.f32.gmra.mrb[0].mxu0 %v637
        %v718 = vpop.f32.mrb[0].mxu0
        %v719 = vadd.f32 %v627, %v718
        %v720 = vpop.f32.mrb[0].mxu0
        %721 = vmatprep.mubr.f32.mxu0 0.0
        %722 = vmatmul.mubr.f32.gmra.mrb[0].mxu0 %v640
        %v723 = vpop.f32.mrb[0].mxu0
        %v724 = vadd.f32 %v627, %v723
        %v725 = vpop.f32.mrb[0].mxu0
        %726 = vdwg.mxu0
        %v727 = vld [vmem:[%s519] sm:$0xff]
        %v728 = vld [vmem:[%s7] sm:$0xff]
        %v729 = vld [vmem:[%s7 + $0x8] sm:$0xff]
        %v730 = vld [vmem:[%s7 + $0x10] sm:$0xff]
        %v731 = vld [vmem:[%s7 + $0x18] sm:$0xff]
        %v732 = vld [vmem:[%s8] sm:$0x1]
        %v734 = vlaneseq
        %v735 = vshrl.u32 %v734, 7
        %v736 = vsub.s32 0, %v735
        %v737 = vrot.slane %v732, %v736
        %v740 = vsel %vm629, %v727, 0
        %742 = vmatprep.subr.mxu0 0.0
        %743 = vmatpush1.msra.mxu0 %v728
        %744 = vmatprep.subr.mxu0 0.0
        %745 = vmatpush1.msra.mxu0 %v729
        %746 = vmatprep.subr.mxu0 0.0
        %747 = vmatpush1.msra.mxu0 %v730
        %748 = vmatprep.subr.mxu0 0.0
        %749 = vmatpush1.msra.mxu0 %v731
        %750 = vmatprep.subr.mxu0 0.0
        %751 = vmatpush1.msra.mxu0 0.0
        %752 = vmatprep.subr.mxu0 0.0
        %753 = vmatpush1.msra.mxu0 0.0
        %754 = vmatprep.subr.mxu0 0.0
        %755 = vmatpush1.msra.mxu0 0.0
        %756 = vmatprep.subr.mxu0 0.0
        %757 = vmatpush1.msra.mxu0 0.0
        %758 = vmatprep.subr.mxu0 0.0
        %759 = vmatpush1.msra.mxu0 0.0
        %760 = vmatprep.subr.mxu0 0.0
        %761 = vmatpush1.msra.mxu0 0.0
        %762 = vmatprep.subr.mxu0 0.0
        %763 = vmatpush1.msra.mxu0 0.0
        %764 = vmatprep.subr.mxu0 0.0
        %765 = vmatpush1.msra.mxu0 0.0
        %766 = vmatprep.subr.mxu0 0.0
        %767 = vmatpush1.msra.mxu0 0.0
        %768 = vmatprep.subr.mxu0 0.0
        %769 = vmatpush1.msra.mxu0 0.0
        %770 = vmatprep.subr.mxu0 0.0
        %771 = vmatpush1.msra.mxu0 0.0
        %772 = vmatprep.subr.mxu0 0.0
        %773 = vmatpush1.msra.mxu0 0.0
        %774 = vmatprep.subr.mxu0 0.0
        %775 = vmatpush1.msra.mxu0 0.0
        %776 = vmatprep.subr.mxu0 0.0
        %777 = vmatpush1.msra.mxu0 0.0
        %778 = vmatprep.subr.mxu0 0.0
        %779 = vmatpush1.msra.mxu0 0.0
        %780 = vmatprep.subr.mxu0 0.0
        %781 = vmatpush1.msra.mxu0 0.0
        %782 = vmatprep.subr.mxu0 0.0
        %783 = vmatpush1.msra.mxu0 0.0
        %784 = vmatprep.subr.mxu0 0.0
        %785 = vmatpush1.msra.mxu0 0.0
        %786 = vmatprep.subr.mxu0 0.0
        %787 = vmatpush1.msra.mxu0 0.0
        %788 = vmatprep.subr.mxu0 0.0
        %789 = vmatpush1.msra.mxu0 0.0
        %790 = vmatprep.subr.mxu0 0.0
        %791 = vmatpush1.msra.mxu0 0.0
        %792 = vmatprep.subr.mxu0 0.0
        %793 = vmatpush1.msra.mxu0 0.0
        %794 = vmatprep.subr.mxu0 0.0
        %795 = vmatpush1.msra.mxu0 0.0
        %796 = vmatprep.subr.mxu0 0.0
        %797 = vmatpush1.msra.mxu0 0.0
        %798 = vmatprep.subr.mxu0 0.0
        %799 = vmatpush1.msra.mxu0 0.0
        %800 = vmatprep.subr.mxu0 0.0
        %801 = vmatpush1.msra.mxu0 0.0
        %802 = vmatprep.subr.mxu0 0.0
        %803 = vmatpush1.msra.mxu0 0.0
        %804 = vmatprep.subr.mxu0 0.0
        %805 = vmatpush1.msra.mxu0 0.0
        %806 = vmatprep.mubr.f32.mxu0 0.0
        %807 = vmatmul.mubr.f32.gmra.mrb[0].mxu0 %v740
        %v808 = vpop.f32.mrb[0].mxu0
        %v809 = vadd.f32 %v737, %v808
        %v810 = vpop.f32.mrb[0].mxu0
        %811 = vdwg.mxu0
        %v812 = vld [vmem:[%s9] sm:$0xff]
        %v813 = vld [vmem:[%s9 + $0x8] sm:$0xff]
        %v814 = vld [vmem:[%s9 + $0x10] sm:$0xff]
        %v815 = vld [vmem:[%s9 + $0x18] sm:$0xff]
        %v816 = vld [vmem:[%s10] sm:$0x1]
        %v818 = vlaneseq
        %v819 = vshrl.u32 %v818, 7
        %v820 = vsub.s32 0, %v819
        %v821 = vrot.slane %v816, %v820
        %823 = vmatprep.subr.mxu0 0.0
        %824 = vmatpush1.msra.mxu0 %v812
        %825 = vmatprep.subr.mxu0 0.0
        %826 = vmatpush1.msra.mxu0 %v813
        %827 = vmatprep.subr.mxu0 0.0
        %828 = vmatpush1.msra.mxu0 %v814
        %829 = vmatprep.subr.mxu0 0.0
        %830 = vmatpush1.msra.mxu0 %v815
        %831 = vmatprep.subr.mxu0 0.0
        %832 = vmatpush1.msra.mxu0 0.0
        %833 = vmatprep.subr.mxu0 0.0
        %834 = vmatpush1.msra.mxu0 0.0
        %835 = vmatprep.subr.mxu0 0.0
        %836 = vmatpush1.msra.mxu0 0.0
        %837 = vmatprep.subr.mxu0 0.0
        %838 = vmatpush1.msra.mxu0 0.0
        %839 = vmatprep.subr.mxu0 0.0
        %840 = vmatpush1.msra.mxu0 0.0
        %841 = vmatprep.subr.mxu0 0.0
        %842 = vmatpush1.msra.mxu0 0.0
        %843 = vmatprep.subr.mxu0 0.0
        %844 = vmatpush1.msra.mxu0 0.0
        %845 = vmatprep.subr.mxu0 0.0
        %846 = vmatpush1.msra.mxu0 0.0
        %847 = vmatprep.subr.mxu0 0.0
        %848 = vmatpush1.msra.mxu0 0.0
        %849 = vmatprep.subr.mxu0 0.0
        %850 = vmatpush1.msra.mxu0 0.0
        %851 = vmatprep.subr.mxu0 0.0
        %852 = vmatpush1.msra.mxu0 0.0
        %853 = vmatprep.subr.mxu0 0.0
        %854 = vmatpush1.msra.mxu0 0.0
        %855 = vmatprep.subr.mxu0 0.0
        %856 = vmatpush1.msra.mxu0 0.0
        %857 = vmatprep.subr.mxu0 0.0
        %858 = vmatpush1.msra.mxu0 0.0
        %859 = vmatprep.subr.mxu0 0.0
        %860 = vmatpush1.msra.mxu0 0.0
        %861 = vmatprep.subr.mxu0 0.0
        %862 = vmatpush1.msra.mxu0 0.0
        %863 = vmatprep.subr.mxu0 0.0
        %864 = vmatpush1.msra.mxu0 0.0
        %865 = vmatprep.subr.mxu0 0.0
        %866 = vmatpush1.msra.mxu0 0.0
        %867 = vmatprep.subr.mxu0 0.0
        %868 = vmatpush1.msra.mxu0 0.0
        %869 = vmatprep.subr.mxu0 0.0
        %870 = vmatpush1.msra.mxu0 0.0
        %871 = vmatprep.subr.mxu0 0.0
        %872 = vmatpush1.msra.mxu0 0.0
        %873 = vmatprep.subr.mxu0 0.0
        %874 = vmatpush1.msra.mxu0 0.0
        %875 = vmatprep.subr.mxu0 0.0
        %876 = vmatpush1.msra.mxu0 0.0
        %877 = vmatprep.subr.mxu0 0.0
        %878 = vmatpush1.msra.mxu0 0.0
        %879 = vmatprep.subr.mxu0 0.0
        %880 = vmatpush1.msra.mxu0 0.0
        %881 = vmatprep.subr.mxu0 0.0
        %882 = vmatpush1.msra.mxu0 0.0
        %883 = vmatprep.subr.mxu0 0.0
        %884 = vmatpush1.msra.mxu0 0.0
        %885 = vmatprep.subr.mxu0 0.0
        %886 = vmatpush1.msra.mxu0 0.0
        %887 = vmatprep.mubr.f32.mxu0 0.0
        %888 = vmatmul.mubr.f32.gmra.mrb[0].mxu0 %v631
        %v889 = vpop.f32.mrb[0].mxu0
        %v890 = vadd.f32 %v821, %v889
        %v891 = vpop.f32.mrb[0].mxu0
        %892 = vmatprep.mubr.f32.mxu0 0.0
        %893 = vmatmul.mubr.f32.gmra.mrb[0].mxu0 %v634
        %v894 = vpop.f32.mrb[0].mxu0
        %v895 = vadd.f32 %v821, %v894
        %v896 = vpop.f32.mrb[0].mxu0
        %897 = vmatprep.mubr.f32.mxu0 0.0
        %898 = vmatmul.mubr.f32.gmra.mrb[0].mxu0 %v637
        %v899 = vpop.f32.mrb[0].mxu0
        %v900 = vadd.f32 %v821, %v899
        %v901 = vpop.f32.mrb[0].mxu0
        %902 = vmatprep.mubr.f32.mxu0 0.0
        %903 = vmatmul.mubr.f32.gmra.mrb[0].mxu0 %v640
        %v904 = vpop.f32.mrb[0].mxu0
        %v905 = vadd.f32 %v821, %v904
        %v906 = vpop.f32.mrb[0].mxu0
        %907 = vdwg.mxu0
        %vm908 = vcmask 23552
        %909 = vst.msk [vmem:[%s608] sm:$0xff] %vm908, %v890
        %910 = vst.msk [vmem:[%s608 + $0x8] sm:$0xff] %vm908, %v895
        %911 = vst.msk [vmem:[%s608 + $0x10] sm:$0xff] %vm908, %v900
        %912 = vst.msk [vmem:[%s608 + $0x18] sm:$0xff] %vm908, %v905
        %v913 = vld [vmem:[%s519] sm:$0xff]
        %v914 = vld [vmem:[%s11] sm:$0xff]
        %v915 = vld [vmem:[%s11 + $0x8] sm:$0xff]
        %v916 = vld [vmem:[%s11 + $0x10] sm:$0xff]
        %v917 = vld [vmem:[%s11 + $0x18] sm:$0xff]
        %v918 = vld [vmem:[%s12] sm:$0x1]
        %v920 = vlaneseq
        %v921 = vshrl.u32 %v920, 7
        %v922 = vsub.s32 0, %v921
        %v923 = vrot.slane %v918, %v922
        %v926 = vsel %vm629, %v913, 0
        %928 = vmatprep.subr.mxu0 0.0
        %929 = vmatpush1.msra.mxu0 %v914
        %930 = vmatprep.subr.mxu0 0.0
        %931 = vmatpush1.msra.mxu0 %v915
        %932 = vmatprep.subr.mxu0 0.0
        %933 = vmatpush1.msra.mxu0 %v916
        %934 = vmatprep.subr.mxu0 0.0
        %935 = vmatpush1.msra.mxu0 %v917
        %936 = vmatprep.subr.mxu0 0.0
        %937 = vmatpush1.msra.mxu0 0.0
        %938 = vmatprep.subr.mxu0 0.0
        %939 = vmatpush1.msra.mxu0 0.0
        %940 = vmatprep.subr.mxu0 0.0
        %941 = vmatpush1.msra.mxu0 0.0
        %942 = vmatprep.subr.mxu0 0.0
        %943 = vmatpush1.msra.mxu0 0.0
        %944 = vmatprep.subr.mxu0 0.0
        %945 = vmatpush1.msra.mxu0 0.0
        %946 = vmatprep.subr.mxu0 0.0
        %947 = vmatpush1.msra.mxu0 0.0
        %948 = vmatprep.subr.mxu0 0.0
        %949 = vmatpush1.msra.mxu0 0.0
        %950 = vmatprep.subr.mxu0 0.0
        %951 = vmatpush1.msra.mxu0 0.0
        %952 = vmatprep.subr.mxu0 0.0
        %953 = vmatpush1.msra.mxu0 0.0
        %954 = vmatprep.subr.mxu0 0.0
        %955 = vmatpush1.msra.mxu0 0.0
        %956 = vmatprep.subr.mxu0 0.0
        %957 = vmatpush1.msra.mxu0 0.0
        %958 = vmatprep.subr.mxu0 0.0
        %959 = vmatpush1.msra.mxu0 0.0
        %960 = vmatprep.subr.mxu0 0.0
        %961 = vmatpush1.msra.mxu0 0.0
        %962 = vmatprep.subr.mxu0 0.0
        %963 = vmatpush1.msra.mxu0 0.0
        %964 = vmatprep.subr.mxu0 0.0
        %965 = vmatpush1.msra.mxu0 0.0
        %966 = vmatprep.subr.mxu0 0.0
        %967 = vmatpush1.msra.mxu0 0.0
        %968 = vmatprep.subr.mxu0 0.0
        %969 = vmatpush1.msra.mxu0 0.0
        %970 = vmatprep.subr.mxu0 0.0
        %971 = vmatpush1.msra.mxu0 0.0
        %972 = vmatprep.subr.mxu0 0.0
        %973 = vmatpush1.msra.mxu0 0.0
        %974 = vmatprep.subr.mxu0 0.0
        %975 = vmatpush1.msra.mxu0 0.0
        %976 = vmatprep.subr.mxu0 0.0
        %977 = vmatpush1.msra.mxu0 0.0
        %978 = vmatprep.subr.mxu0 0.0
        %979 = vmatpush1.msra.mxu0 0.0
        %980 = vmatprep.subr.mxu0 0.0
        %981 = vmatpush1.msra.mxu0 0.0
        %982 = vmatprep.subr.mxu0 0.0
        %983 = vmatpush1.msra.mxu0 0.0
        %984 = vmatprep.subr.mxu0 0.0
        %985 = vmatpush1.msra.mxu0 0.0
        %986 = vmatprep.subr.mxu0 0.0
        %987 = vmatpush1.msra.mxu0 0.0
        %988 = vmatprep.subr.mxu0 0.0
        %989 = vmatpush1.msra.mxu0 0.0
        %990 = vmatprep.subr.mxu0 0.0
        %991 = vmatpush1.msra.mxu0 0.0
        %992 = vmatprep.mubr.f32.mxu0 0.0
        %993 = vmatmul.mubr.f32.gmra.mrb[0].mxu0 %v926
        %v994 = vpop.f32.mrb[0].mxu0
        %v995 = vadd.f32 %v923, %v994
        %v996 = vpop.f32.mrb[0].mxu0
        %997 = vdwg.mxu0
        %vm998 = vcmask 31744
        %999 = vst.msk [vmem:[%s613] sm:$0xff] %vm998, %v995
        %v1000 = vld [vmem:[%s3] sm:$0xff]
        %v1001 = vld [vmem:[%s3 + $0x8] sm:$0xff]
        %v1002 = vld [vmem:[%s3 + $0x10] sm:$0xff]
        %v1003 = vld [vmem:[%s3 + $0x18] sm:$0xff]
        %v1004 = vld [vmem:[%s602] sm:$0xff]
        %v1005 = vld [vmem:[%s602 + $0x8] sm:$0xff]
        %v1006 = vld [vmem:[%s602 + $0x10] sm:$0xff]
        %v1007 = vld [vmem:[%s602 + $0x18] sm:$0xff]
        %v1008 = vld [vmem:[%s602 + $0x20] sm:$0xff]
        %v1009 = vld [vmem:[%s602 + $0x28] sm:$0xff]
        %v1010 = vld [vmem:[%s602 + $0x30] sm:$0xff]
        %v1011 = vld [vmem:[%s602 + $0x38] sm:$0xff]
        %v1012 = vld [vmem:[%s4] sm:$0xff]
        %v1013 = vld [vmem:[%s4 + $0x8] sm:$0xff]
        %v1014 = vld [vmem:[%s4 + $0x10] sm:$0xff]
        %v1015 = vld [vmem:[%s4 + $0x18] sm:$0xff]
        %1017 = vset.pattern.permute.xlu0 0
        %1018 = vperm.xlu0 %1017, %v1012
        %v1019 = vpop.permute.xlu0 %1018
        %1022 = vset.pattern.permute.xlu0 0
        %1023 = vperm.xlu0 %1022, %v1013
        %v1024 = vpop.permute.xlu0 %1023
        %1027 = vset.pattern.permute.xlu0 0
        %1028 = vperm.xlu0 %1027, %v1014
        %v1029 = vpop.permute.xlu0 %1028
        %1032 = vset.pattern.permute.xlu0 0
        %1033 = vperm.xlu0 %1032, %v1015
        %v1034 = vpop.permute.xlu0 %1033
        %v1037 = vsel %vm629, %v1000, 0
        %v1040 = vsel %vm629, %v1001, 0
        %v1043 = vsel %vm629, %v1002, 0
        %v1046 = vsel %vm629, %v1003, 0
        %1048 = vmatprep.subr.mxu0 %v1005
        %1049 = vmatpush1.msra.mxu0 %v1004
        %1050 = vmatprep.subr.mxu0 %v1007
        %1051 = vmatpush1.msra.mxu0 %v1006
        %1052 = vmatprep.subr.mxu0 %v1009
        %1053 = vmatpush1.msra.mxu0 %v1008
        %1054 = vmatprep.subr.mxu0 %v1011
        %1055 = vmatpush1.msra.mxu0 %v1010
        %1056 = vmatprep.subr.mxu0 0.0
        %1057 = vmatpush1.msra.mxu0 0.0
        %1058 = vmatprep.subr.mxu0 0.0
        %1059 = vmatpush1.msra.mxu0 0.0
        %1060 = vmatprep.subr.mxu0 0.0
        %1061 = vmatpush1.msra.mxu0 0.0
        %1062 = vmatprep.subr.mxu0 0.0
        %1063 = vmatpush1.msra.mxu0 0.0
        %1064 = vmatprep.subr.mxu0 0.0
        %1065 = vmatpush1.msra.mxu0 0.0
        %1066 = vmatprep.subr.mxu0 0.0
        %1067 = vmatpush1.msra.mxu0 0.0
        %1068 = vmatprep.subr.mxu0 0.0
        %1069 = vmatpush1.msra.mxu0 0.0
        %1070 = vmatprep.subr.mxu0 0.0
        %1071 = vmatpush1.msra.mxu0 0.0
        %1072 = vmatprep.subr.mxu0 0.0
        %1073 = vmatpush1.msra.mxu0 0.0
        %1074 = vmatprep.subr.mxu0 0.0
        %1075 = vmatpush1.msra.mxu0 0.0
        %1076 = vmatprep.subr.mxu0 0.0
        %1077 = vmatpush1.msra.mxu0 0.0
        %1078 = vmatprep.subr.mxu0 0.0
        %1079 = vmatpush1.msra.mxu0 0.0
        %1080 = vmatprep.subr.mxu0 0.0
        %1081 = vmatpush1.msra.mxu0 0.0
        %1082 = vmatprep.subr.mxu0 0.0
        %1083 = vmatpush1.msra.mxu0 0.0
        %1084 = vmatprep.subr.mxu0 0.0
        %1085 = vmatpush1.msra.mxu0 0.0
        %1086 = vmatprep.subr.mxu0 0.0
        %1087 = vmatpush1.msra.mxu0 0.0
        %1088 = vmatprep.subr.mxu0 0.0
        %1089 = vmatpush1.msra.mxu0 0.0
        %1090 = vmatprep.subr.mxu0 0.0
        %1091 = vmatpush1.msra.mxu0 0.0
        %1092 = vmatprep.subr.mxu0 0.0
        %1093 = vmatpush1.msra.mxu0 0.0
        %1094 = vmatprep.subr.mxu0 0.0
        %1095 = vmatpush1.msra.mxu0 0.0
        %1096 = vmatprep.subr.mxu0 0.0
        %1097 = vmatpush1.msra.mxu0 0.0
        %1098 = vmatprep.subr.mxu0 0.0
        %1099 = vmatpush1.msra.mxu0 0.0
        %1100 = vmatprep.subr.mxu0 0.0
        %1101 = vmatpush1.msra.mxu0 0.0
        %1102 = vmatprep.subr.mxu0 0.0
        %1103 = vmatpush1.msra.mxu0 0.0
        %1104 = vmatprep.subr.mxu0 0.0
        %1105 = vmatpush1.msra.mxu0 0.0
        %1106 = vmatprep.subr.mxu0 0.0
        %1107 = vmatpush1.msra.mxu0 0.0
        %1108 = vmatprep.subr.mxu0 0.0
        %1109 = vmatpush1.msra.mxu0 0.0
        %1110 = vmatprep.subr.mxu0 0.0
        %1111 = vmatpush1.msra.mxu0 0.0
        %1112 = vmatprep.mubr.f32.mxu0 0.0
        %1113 = vmatmul.mubr.f32.gmra.mrb[0].mxu0 %v1037
        %v1114 = vpop.f32.mrb[0].mxu0
        %v1115 = vadd.f32 %v1019, %v1114
        %v1116 = vpop.f32.mrb[0].mxu0
        %v1117 = vadd.f32 %v1019, %v1116
        %1118 = vmatprep.mubr.f32.mxu0 0.0
        %1119 = vmatmul.mubr.f32.gmra.mrb[0].mxu0 %v1040
        %v1120 = vpop.f32.mrb[0].mxu0
        %v1121 = vadd.f32 %v1024, %v1120
        %v1122 = vpop.f32.mrb[0].mxu0
        %v1123 = vadd.f32 %v1024, %v1122
        %1124 = vmatprep.mubr.f32.mxu0 0.0
        %1125 = vmatmul.mubr.f32.gmra.mrb[0].mxu0 %v1043
        %v1126 = vpop.f32.mrb[0].mxu0
        %v1127 = vadd.f32 %v1029, %v1126
        %v1128 = vpop.f32.mrb[0].mxu0
        %v1129 = vadd.f32 %v1029, %v1128
        %1130 = vmatprep.mubr.f32.mxu0 0.0
        %1131 = vmatmul.mubr.f32.gmra.mrb[0].mxu0 %v1046
        %v1132 = vpop.f32.mrb[0].mxu0
        %v1133 = vadd.f32 %v1034, %v1132
        %v1134 = vpop.f32.mrb[0].mxu0
        %v1135 = vadd.f32 %v1034, %v1134
        %1136 = vdwg.mxu0
        %v1138 = vsel %vm629, %v709, 0
        %v1141 = vsel %vm629, %v714, 0
        %v1144 = vsel %vm629, %v719, 0
        %v1147 = vsel %vm629, %v724, 0
        %1149 = vmatprep.subr.mxu0 %v1117
        %1150 = vmatpush1.msra.mxu0 %v1115
        %1151 = vmatprep.subr.mxu0 %v1123
        %1152 = vmatpush1.msra.mxu0 %v1121
        %1153 = vmatprep.subr.mxu0 %v1129
        %1154 = vmatpush1.msra.mxu0 %v1127
        %1155 = vmatprep.subr.mxu0 %v1135
        %1156 = vmatpush1.msra.mxu0 %v1133
        %1157 = vmatprep.subr.mxu0 0.0
        %1158 = vmatpush1.msra.mxu0 0.0
        %1159 = vmatprep.subr.mxu0 0.0
        %1160 = vmatpush1.msra.mxu0 0.0
        %1161 = vmatprep.subr.mxu0 0.0
        %1162 = vmatpush1.msra.mxu0 0.0
        %1163 = vmatprep.subr.mxu0 0.0
        %1164 = vmatpush1.msra.mxu0 0.0
        %1165 = vmatprep.subr.mxu0 0.0
        %1166 = vmatpush1.msra.mxu0 0.0
        %1167 = vmatprep.subr.mxu0 0.0
        %1168 = vmatpush1.msra.mxu0 0.0
        %1169 = vmatprep.subr.mxu0 0.0
        %1170 = vmatpush1.msra.mxu0 0.0
        %1171 = vmatprep.subr.mxu0 0.0
        %1172 = vmatpush1.msra.mxu0 0.0
        %1173 = vmatprep.subr.mxu0 0.0
        %1174 = vmatpush1.msra.mxu0 0.0
        %1175 = vmatprep.subr.mxu0 0.0
        %1176 = vmatpush1.msra.mxu0 0.0
        %1177 = vmatprep.subr.mxu0 0.0
        %1178 = vmatpush1.msra.mxu0 0.0
        %1179 = vmatprep.subr.mxu0 0.0
        %1180 = vmatpush1.msra.mxu0 0.0
        %1181 = vmatprep.subr.mxu0 0.0
        %1182 = vmatpush1.msra.mxu0 0.0
        %1183 = vmatprep.subr.mxu0 0.0
        %1184 = vmatpush1.msra.mxu0 0.0
        %1185 = vmatprep.subr.mxu0 0.0
        %1186 = vmatpush1.msra.mxu0 0.0
        %1187 = vmatprep.subr.mxu0 0.0
        %1188 = vmatpush1.msra.mxu0 0.0
        %1189 = vmatprep.subr.mxu0 0.0
        %1190 = vmatpush1.msra.mxu0 0.0
        %1191 = vmatprep.subr.mxu0 0.0
        %1192 = vmatpush1.msra.mxu0 0.0
        %1193 = vmatprep.subr.mxu0 0.0
        %1194 = vmatpush1.msra.mxu0 0.0
        %1195 = vmatprep.subr.mxu0 0.0
        %1196 = vmatpush1.msra.mxu0 0.0
        %1197 = vmatprep.subr.mxu0 0.0
        %1198 = vmatpush1.msra.mxu0 0.0
        %1199 = vmatprep.subr.mxu0 0.0
        %1200 = vmatpush1.msra.mxu0 0.0
        %1201 = vmatprep.subr.mxu0 0.0
        %1202 = vmatpush1.msra.mxu0 0.0
        %1203 = vmatprep.subr.mxu0 0.0
        %1204 = vmatpush1.msra.mxu0 0.0
        %1205 = vmatprep.subr.mxu0 0.0
        %1206 = vmatpush1.msra.mxu0 0.0
        %1207 = vmatprep.subr.mxu0 0.0
        %1208 = vmatpush1.msra.mxu0 0.0
        %1209 = vmatprep.subr.mxu0 0.0
        %1210 = vmatpush1.msra.mxu0 0.0
        %1211 = vmatprep.subr.mxu0 0.0
        %1212 = vmatpush1.msra.mxu0 0.0
        %1213 = vmatprep.mubr.f32.mxu0 0.0
        %1214 = vmatmul.mubr.f32.gmra.mrb[0].mxu0 %v1138
        %v1215 = vpop.f32.mrb[0].mxu0
        %v1216 = vadd.f32 0.0, %v1215
        %v1217 = vpop.f32.mrb[0].mxu0
        %v1218 = vadd.f32 0.0, %v1217
        %1219 = vmatprep.mubr.f32.mxu0 0.0
        %1220 = vmatmul.mubr.f32.gmra.mrb[0].mxu0 %v1141
        %v1221 = vpop.f32.mrb[0].mxu0
        %v1222 = vadd.f32 0.0, %v1221
        %v1223 = vpop.f32.mrb[0].mxu0
        %v1224 = vadd.f32 0.0, %v1223
        %1225 = vmatprep.mubr.f32.mxu0 0.0
        %1226 = vmatmul.mubr.f32.gmra.mrb[0].mxu0 %v1144
        %v1227 = vpop.f32.mrb[0].mxu0
        %v1228 = vadd.f32 0.0, %v1227
        %v1229 = vpop.f32.mrb[0].mxu0
        %v1230 = vadd.f32 0.0, %v1229
        %1231 = vmatprep.mubr.f32.mxu0 0.0
        %1232 = vmatmul.mubr.f32.gmra.mrb[0].mxu0 %v1147
        %v1233 = vpop.f32.mrb[0].mxu0
        %v1234 = vadd.f32 0.0, %v1233
        %v1235 = vpop.f32.mrb[0].mxu0
        %v1236 = vadd.f32 0.0, %v1235
        %1237 = vdwg.mxu0
        %1238 = vst [vmem:[%s571] sm:$0xff] %v1216
        %1239 = vst [vmem:[%s571 + $0x8] sm:$0xff] %v1218
        %1240 = vst [vmem:[%s571 + $0x10] sm:$0xff] %v1222
        %1241 = vst [vmem:[%s571 + $0x18] sm:$0xff] %v1224
        %1242 = vst [vmem:[%s571 + $0x20] sm:$0xff] %v1228
        %1243 = vst [vmem:[%s571 + $0x28] sm:$0xff] %v1230
        %1244 = vst [vmem:[%s571 + $0x30] sm:$0xff] %v1234
        %1245 = vst [vmem:[%s571 + $0x38] sm:$0xff] %v1236
        %v1247 = vsel %vm629, %v809, 0
        %1249 = vmatprep.subr.mxu0 %v1117
        %1250 = vmatpush1.msra.mxu0 %v1115
        %1251 = vmatprep.subr.mxu0 %v1123
        %1252 = vmatpush1.msra.mxu0 %v1121
        %1253 = vmatprep.subr.mxu0 %v1129
        %1254 = vmatpush1.msra.mxu0 %v1127
        %1255 = vmatprep.subr.mxu0 %v1135
        %1256 = vmatpush1.msra.mxu0 %v1133
        %1257 = vmatprep.subr.mxu0 0.0
        %1258 = vmatpush1.msra.mxu0 0.0
        %1259 = vmatprep.subr.mxu0 0.0
        %1260 = vmatpush1.msra.mxu0 0.0
        %1261 = vmatprep.subr.mxu0 0.0
        %1262 = vmatpush1.msra.mxu0 0.0
        %1263 = vmatprep.subr.mxu0 0.0
        %1264 = vmatpush1.msra.mxu0 0.0
        %1265 = vmatprep.subr.mxu0 0.0
        %1266 = vmatpush1.msra.mxu0 0.0
        %1267 = vmatprep.subr.mxu0 0.0
        %1268 = vmatpush1.msra.mxu0 0.0
        %1269 = vmatprep.subr.mxu0 0.0
        %1270 = vmatpush1.msra.mxu0 0.0
        %1271 = vmatprep.subr.mxu0 0.0
        %1272 = vmatpush1.msra.mxu0 0.0
        %1273 = vmatprep.subr.mxu0 0.0
        %1274 = vmatpush1.msra.mxu0 0.0
        %1275 = vmatprep.subr.mxu0 0.0
        %1276 = vmatpush1.msra.mxu0 0.0
        %1277 = vmatprep.subr.mxu0 0.0
        %1278 = vmatpush1.msra.mxu0 0.0
        %1279 = vmatprep.subr.mxu0 0.0
        %1280 = vmatpush1.msra.mxu0 0.0
        %1281 = vmatprep.subr.mxu0 0.0
        %1282 = vmatpush1.msra.mxu0 0.0
        %1283 = vmatprep.subr.mxu0 0.0
        %1284 = vmatpush1.msra.mxu0 0.0
        %1285 = vmatprep.subr.mxu0 0.0
        %1286 = vmatpush1.msra.mxu0 0.0
        %1287 = vmatprep.subr.mxu0 0.0
        %1288 = vmatpush1.msra.mxu0 0.0
        %1289 = vmatprep.subr.mxu0 0.0
        %1290 = vmatpush1.msra.mxu0 0.0
        %1291 = vmatprep.subr.mxu0 0.0
        %1292 = vmatpush1.msra.mxu0 0.0
        %1293 = vmatprep.subr.mxu0 0.0
        %1294 = vmatpush1.msra.mxu0 0.0
        %1295 = vmatprep.subr.mxu0 0.0
        %1296 = vmatpush1.msra.mxu0 0.0
        %1297 = vmatprep.subr.mxu0 0.0
        %1298 = vmatpush1.msra.mxu0 0.0
        %1299 = vmatprep.subr.mxu0 0.0
        %1300 = vmatpush1.msra.mxu0 0.0
        %1301 = vmatprep.subr.mxu0 0.0
        %1302 = vmatpush1.msra.mxu0 0.0
        %1303 = vmatprep.subr.mxu0 0.0
        %1304 = vmatpush1.msra.mxu0 0.0
        %1305 = vmatprep.subr.mxu0 0.0
        %1306 = vmatpush1.msra.mxu0 0.0
        %1307 = vmatprep.subr.mxu0 0.0
        %1308 = vmatpush1.msra.mxu0 0.0
        %1309 = vmatprep.subr.mxu0 0.0
        %1310 = vmatpush1.msra.mxu0 0.0
        %1311 = vmatprep.subr.mxu0 0.0
        %1312 = vmatpush1.msra.mxu0 0.0
        %1313 = vmatprep.mubr.f32.mxu0 0.0
        %1314 = vmatmul.mubr.f32.gmra.mrb[0].mxu0 %v1247
        %v1315 = vpop.f32.mrb[0].mxu0
        %v1316 = vadd.f32 0.0, %v1315
        %v1317 = vpop.f32.mrb[0].mxu0
        %v1318 = vadd.f32 0.0, %v1317
        %1319 = vdwg.mxu0
        %1320 = vst [vmem:[%s578] sm:$0xff] %v1316
        %1321 = vst [vmem:[%s578 + $0x8] sm:$0xff] %v1318
        %s1322 = sand.u32 %s333, 1
        %s1323 = scalar_lea.sflag [#allocation4], %s1322
        %s1324 = sand.u32 %s333, 1
        %s1325 = smul.addr %s1324, 64
        %s1326 = scalar_lea.vmem [#allocation5], %s1325
        %s1327 = sand.u32 %s359, 1
        %s1328 = scalar_lea.sflag [#allocation7], %s1327
        %s1329 = sand.u32 %s359, 1
        %s1330 = smul.addr %s1329, 16
        %s1331 = scalar_lea.vmem [#allocation6], %s1330
        %s1332 = smul.u32 4, %s37
        %p1333 = scmp.lt.s32.totalorder %s1332, 7
        %s1334 = scalar_select %p1333, %s1332, 7
        %s1335 = smul.addr %s1334, 8
        %s1336 = scalar_lea.vmem %s15, %s1335
        %p1337 = scmp.lt.s32.totalorder %s37, 1
        %s1338 = scalar_select %p1337, %s37, 1
        %s1339 = smul.addr %s1338, 8
        %s1340 = scalar_lea.vmem %s16, %s1339
        // Predicated region
        $region77: #{tpu_custom_call.1} parent=71 // pred_check
          %p1341 = pneg %p343
        $region78: #{tpu_custom_call.1} parent=71 // pred_check_branch
          %1343 = sbr.rel (%p1341) target = $region80
        $region79: #{tpu_custom_call.1} parent=71 // pred_region
          %s1344 = smul.u32 4, %s37
          %s1346 = ssub.s32 1024, 1024
          %1347 = vsyncadd %s1323, %s1346
          %s1348 = smul.addr %s1344, 2
          %s1349 = smul.addr %s1348, 128
          %s1350 = scalar_lea.hbm %s13, %s1349
          %s1351 = sshll.u32 %s1326, 4
          %s1352 = int_to_ptr.vmem [resolvable:$true] %s1351
          %1357 = dma.vmem_to_hbm [thread:$0]  %s1352, 1024, %s1350, %s1323, 256, 256, 16
        $region80: #{tpu_custom_call.1} parent=71 // pred_fallthru
          _
        // Predicated region
        $region81: #{tpu_custom_call.1} parent=71 // pred_check
          %p1358 = pneg %p369
        $region82: #{tpu_custom_call.1} parent=71 // pred_check_branch
          %1360 = sbr.rel (%p1358) target = $region84
        $region83: #{tpu_custom_call.1} parent=71 // pred_region
          %s1362 = ssub.s32 256, 256
          %1363 = vsyncadd %s1328, %s1362
          %s1364 = smul.addr %s37, 2
          %s1365 = smul.addr %s1364, 128
          %s1366 = scalar_lea.hbm %s14, %s1365
          %s1368 = sshll.u32 %s1331, 4
          %s1369 = int_to_ptr.vmem [resolvable:$true] %s1368
          %1371 = dma.vmem_to_hbm [thread:$0]  %s1369, 256, %s1366, %s1328
        $region84: #{tpu_custom_call.1} parent=71 // pred_fallthru
          _
        // Predicated region
        $region85: #{tpu_custom_call.1} parent=71 // pred_check
          %p1372 = pneg %p395
        $region86: #{tpu_custom_call.1} parent=71 // pred_check_branch
          %1374 = sbr.rel (%p1372) target = $region88
        $region87: #{tpu_custom_call.1} parent=71 // pred_region
          %s1375 = smul.u32 4, %s37
        $region88: #{tpu_custom_call.1} parent=71 // pred_fallthru
          _
        // Predicated region
        $region89: #{tpu_custom_call.1} parent=71 // pred_check
          %p1376 = pneg %p421
        $region90: #{tpu_custom_call.1} parent=71 // pred_check_branch
          %1378 = sbr.rel (%p1376) target = $region92
        $region91: #{tpu_custom_call.1} parent=71 // pred_region
          _
        $region92: #{tpu_custom_call.1} parent=71 // pred_fallthru
          _
      $region72: #{tpu_custom_call.1} parent=5 // pred_fallthru
        _
      %p1379 = scmp.le.s32.totalorder 2, %s32
      // Predicated region
      $region93: #{tpu_custom_call.1} parent=5 // pred_check
        %p1380 = pneg %p1379
      $region94: #{tpu_custom_call.1} parent=5 // pred_check_branch
        %1382 = sbr.rel (%p1380) target = $region96
      $region95: #{tpu_custom_call.1} parent=5 // pred_region
        %s1383 = ssub.s32 %s32, 2
        // Predicated region
        $region97: #{tpu_custom_call.1} parent=95 // pred_check
          %p1384 = pneg %p349
        $region98: #{tpu_custom_call.1} parent=95 // pred_check_branch
          %1386 = sbr.rel (%p1384) target = $region100
        $region99: #{tpu_custom_call.1} parent=95 // pred_region
          %s1387 = sand.u32 %s334, 1
          %s1388 = scalar_lea.sflag [#allocation4], %s1387
          %s1389 = sand.u32 %s334, 1
          %s1390 = smul.addr %s1389, 64
          %s1391 = scalar_lea.vmem [#allocation5], %s1390
          %1392 = dma.done %s1388, 1024
        $region100: #{tpu_custom_call.1} parent=95 // pred_fallthru
          _
        // Predicated region
        $region101: #{tpu_custom_call.1} parent=95 // pred_check
          %p1393 = pneg %p375
        $region102: #{tpu_custom_call.1} parent=95 // pred_check_branch
          %1395 = sbr.rel (%p1393) target = $region104
        $region103: #{tpu_custom_call.1} parent=95 // pred_region
          %s1396 = sand.u32 %s360, 1
          %s1397 = scalar_lea.sflag [#allocation7], %s1396
          %s1398 = sand.u32 %s360, 1
          %s1399 = smul.addr %s1398, 16
          %s1400 = scalar_lea.vmem [#allocation6], %s1399
          %1401 = dma.done %s1397, 256
        $region104: #{tpu_custom_call.1} parent=95 // pred_fallthru
          _
        // Predicated region
        $region105: #{tpu_custom_call.1} parent=95 // pred_check
          %p1402 = pneg %p401
        $region106: #{tpu_custom_call.1} parent=95 // pred_check_branch
          %1404 = sbr.rel (%p1402) target = $region108
        $region107: #{tpu_custom_call.1} parent=95 // pred_region
          %s1405 = smul.u32 4, %s38
          %p1406 = scmp.lt.s32.totalorder %s1405, 7
          %s1407 = scalar_select %p1406, %s1405, 7
          %s1408 = smul.addr %s1407, 8
          %s1409 = scalar_lea.vmem %s15, %s1408
        $region108: #{tpu_custom_call.1} parent=95 // pred_fallthru
          _
        // Predicated region
        $region109: #{tpu_custom_call.1} parent=95 // pred_check
          %p1410 = pneg %p427
        $region110: #{tpu_custom_call.1} parent=95 // pred_check_branch
          %1412 = sbr.rel (%p1410) target = $region112
        $region111: #{tpu_custom_call.1} parent=95 // pred_region
          %p1413 = scmp.lt.s32.totalorder %s38, 1
          %s1414 = scalar_select %p1413, %s38, 1
          %s1415 = smul.addr %s1414, 8
          %s1416 = scalar_lea.vmem %s16, %s1415
        $region112: #{tpu_custom_call.1} parent=95 // pred_fallthru
          _
      $region96: #{tpu_custom_call.1} parent=5 // pred_fallthru
        _
    $region6: #{tpu_custom_call.1} parent=1 // loop_footer
      %s36 = sadd.s32 1, %s32
    $region7: #{tpu_custom_call.1} parent=1 // loop_footer_branch
      %31 = sbr.rel target = $region3
    $region8: #{tpu_custom_call.1} parent=1 // loop_exit
      _
    %1417 = vsyncpa [#allocation3], 1
    %s1418 = scalar_lea.sflag [#allocation3], 1
    %1419 = vsyncpa %s1418, 1
    %1420 = vsyncpa [#allocation4], 1
    %s1421 = scalar_lea.sflag [#allocation4], 1
    %1422 = vsyncpa %s1421, 1
    %1423 = vsyncpa [#allocation7], 1
    %s1424 = scalar_lea.sflag [#allocation7], 1
    %1425 = vsyncpa %s1424, 1

</llo_original>
